<compile_context>
chip_gen: v7x
topology: tpu7x:2x2x1
jax: 0.10.0
libtpu: 0.0.40
codegen_flags: <defaults>
</compile_context>

<pallas_src>
import math

import jax
import jax.numpy as jnp
from jax.experimental import pallas as pl
from jax.experimental.pallas import tpu as pltpu

D_MODEL = 48          # divisible by 6 (VolPE) and by nhead
NHEAD = 4
DIM = D_MODEL // NHEAD
LN_EPS = 1e-5


def _layer_norm(t, g, b):
    mu = jnp.mean(t, axis=-1, keepdims=True)
    var = jnp.mean((t - mu) ** 2, axis=-1, keepdims=True)
    return (t - mu) * jax.lax.rsqrt(var + LN_EPS) * g + b


# ----------------------------------------------------------------------------
# Pallas kernel: grid = (batch, query tiles, kv tiles); online softmax over kv.
# Heads are a batch dimension of the dot_generals (no lane slicing in the loop).
# ----------------------------------------------------------------------------
def geom_attn_kernel(x_ref, q_ref, k_ref, v_ref,
                     wm_ref, w1_ref, w2_ref, ln_ref,
                     out_ref,
                     m_scr, l_scr, acc_scr):
    kj = pl.program_id(2)
    n_kv = pl.num_programs(2)

    # ---- init (once per (batch, query tile)) ----
    @pl.when(kj == 0)
    def _init():
        m_scr[...] = jnp.full_like(m_scr, -jnp.inf)
        l_scr[...] = jnp.zeros_like(l_scr)
        acc_scr[...] = jnp.zeros_like(acc_scr)

    # ---- flash (online softmax) update for this kv tile, all heads at once ----
    q = q_ref[0]                                   # [H, tq, DIM]  bf16 (scale folded into Wq)
    k = k_ref[0]                                   # [H, tkv, DIM] bf16 (rotary pre-applied)
    v = v_ref[0]                                   # [H, tkv, DIM] bf16

    logits = jax.lax.dot_general(                  # [H, tq, tkv]  f32
        q, k, (((2,), (2,)), ((0,), (0,))),
        preferred_element_type=jnp.float32)

    m_prev = m_scr[...]                            # [H, tq, 1] f32
    m_new = jnp.maximum(m_prev, jnp.max(logits, axis=-1, keepdims=True))
    alpha = jnp.exp(m_prev - m_new)
    p = jnp.exp(logits - m_new)                    # [H, tq, tkv] f32
    l_scr[...] = alpha * l_scr[...] + jnp.sum(p, axis=-1, keepdims=True)
    pv = jax.lax.dot_general(                      # [H, tq, DIM] f32
        p.astype(v.dtype), v, (((2,), (1,)), ((0,), (0,))),
        preferred_element_type=jnp.float32)
    acc_scr[...] = alpha * acc_scr[...] + pv
    m_scr[...] = m_new

    # ---- finalize (last kv tile): merge + norm1 + MLP + norm2 + residual ----
    @pl.when(kj == n_kv - 1)
    def _finalize():
        o = acc_scr[...] / l_scr[...]              # exact reciprocal; [H, tq, DIM] f32
        o = jnp.concatenate([o[h] for h in range(NHEAD)], axis=-1)   # [tq, d]
        ln = ln_ref[...]                                             # [4, d] f32
        message = jnp.dot(o.astype(jnp.bfloat16), wm_ref[...],
                          preferred_element_type=jnp.float32)
        message = _layer_norm(message, ln[0:1, :], ln[1:2, :])
        x = x_ref[0].astype(jnp.float32)                             # [tq, d]
        cat = jnp.concatenate([x, message], axis=-1)                 # [tq, 2d]
        h1 = jnp.maximum(
            jnp.dot(cat.astype(jnp.bfloat16), w1_ref[...],
                    preferred_element_type=jnp.float32), 0.0)
        message = jnp.dot(h1.astype(jnp.bfloat16), w2_ref[...],
                          preferred_element_type=jnp.float32)
        message = _layer_norm(message, ln[2:3, :], ln[3:4, :])
        out_ref[0] = (x + message).astype(out_ref.dtype)


# ----------------------------------------------------------------------------
# Wrapper
# ----------------------------------------------------------------------------
def geometry_attention_layer(x, source, x_pe, source_pe, params,
                             *, tq=256, tkv=512, kv_buffers=None):
    """x: [B,N,d], source: [B,S,d], x_pe/source_pe: [B,*,d,2] (VolPE 'rotary').

    tq / tkv are query / key-value tile sizes (defaults sized so the per-step
    VMEM footprint, including the [H,tq,tkv] softmax temporaries, stays well
    inside a 32 MiB scoped-VMEM budget on all generations).  kv_buffers, if
    given, deepens pipelining of the kv stream (useful on v5e).
    """
    B, N, d = x.shape
    S = source.shape[1]
    assert d == D_MODEL, f"kernel compiled for d_model={D_MODEL}, got {d}"
    tq, tkv = min(tq, N), min(tkv, S)
    assert N % tq == 0 and S % tkv == 0, "sequence lengths must divide tile sizes"
    assert (tq % 8 == 0 or tq == N) and (tkv % 8 == 0 or tkv == S)

    prec = jax.lax.Precision.HIGHEST
    scale = 1.0 / math.sqrt(DIM)

    def rotary(t, pe):
        cos, sin = pe[..., 0], pe[..., 1]
        t2 = jnp.stack([-t[..., 1::2], t[..., ::2]], axis=-1).reshape(t.shape)
        return t * cos + t2 * sin

    # --- one-time packing / projection (outside the per-step hot path) ---
    qw = rotary(jnp.einsum('bnd,de->bne', x, params["wq"] * scale, precision=prec), x_pe)
    kw = rotary(jnp.einsum('bnd,de->bne', source, params["wk"], precision=prec), source_pe)
    vw = jnp.einsum('bnd,de->bne', source, params["wv"], precision=prec)

    def to_heads(t):                                   # [B,T,d] -> [B,H,T,DIM] bf16
        b_, t_, _ = t.shape
        return (t.reshape(b_, t_, NHEAD, DIM)
                  .transpose(0, 2, 1, 3)
                  .astype(jnp.bfloat16))

    q_heads, k_heads, v_heads = to_heads(qw), to_heads(kw), to_heads(vw)

    ln_pack = jnp.concatenate(
        [params["ln1_g"].reshape(1, d), params["ln1_b"].reshape(1, d),
         params["ln2_g"].reshape(1, d), params["ln2_b"].reshape(1, d)],
        axis=0).astype(jnp.float32)                                       # [4, d]
    wm = params["wm"].astype(jnp.bfloat16)
    w1 = params["w1"].astype(jnp.bfloat16)
    w2 = params["w2"].astype(jnp.bfloat16)

    grid = (B, N // tq, S // tkv)

    def q_spec():
        return pl.BlockSpec((1, NHEAD, tq, DIM), lambda b, qi, kj: (b, 0, qi, 0))

    def kv_spec():
        kwargs = {}
        if kv_buffers is not None:
            kwargs["pipeline_mode"] = pl.Buffered(kv_buffers)
        return pl.BlockSpec((1, NHEAD, tkv, DIM),
                            lambda b, qi, kj: (b, 0, kj, 0), **kwargs)

    def w_spec(shape):
        return pl.BlockSpec(shape, lambda b, qi, kj: (0, 0))

    x_spec = pl.BlockSpec((1, tq, d), lambda b, qi, kj: (b, qi, 0))

    return pl.pallas_call(
        geom_attn_kernel,
        out_shape=jax.ShapeDtypeStruct((B, N, d), x.dtype),
        grid_spec=pltpu.PrefetchScalarGridSpec(
            num_scalar_prefetch=0,
            grid=grid,
            in_specs=[
                x_spec,                   # x (f32, residual / concat path)
                q_spec(),                 # rotary(q)/sqrt(DIM), head-major, bf16
                kv_spec(),                # rotary(k), head-major, bf16
                kv_spec(),                # v, head-major, bf16
                w_spec((d, d)),           # merge
                w_spec((2 * d, 2 * d)),   # mlp W1
                w_spec((2 * d, d)),       # mlp W2
                w_spec((4, d)),           # packed LN gamma/beta (norm1, norm2)
            ],
            out_specs=x_spec,
            scratch_shapes=[
                pltpu.VMEM((NHEAD, tq, 1), jnp.float32),     # running max
                pltpu.VMEM((NHEAD, tq, 1), jnp.float32),     # running denom
                pltpu.VMEM((NHEAD, tq, DIM), jnp.float32),   # output accumulator
            ],
        ),
        compiler_params=pltpu.CompilerParams(
            dimension_semantics=("parallel", "parallel", "arbitrary"),
            vmem_limit_bytes=32 * 1024 * 1024),
    )(x, q_heads, k_heads, v_heads, wm, w1, w2, ln_pack)


# ----------------------------------------------------------------------------
# VolPE (rotary) positional code — plain-JAX glue, mirrors the PyTorch module.
# ----------------------------------------------------------------------------
def volpe_rotary(xyz, feature_dim, voxel_size=0.08, vol_origin=(-3.6, -2.4, 1.14)):
    B, N, _ = xyz.shape
    vox = (xyz - jnp.asarray(vol_origin, jnp.float32).reshape(1, 1, 3)) / voxel_size
    ndiv = feature_dim // 3
    div_term = jnp.exp(jnp.arange(0, ndiv, 2, dtype=jnp.float32)
                       * (-math.log(10000.0) / ndiv)).reshape(1, 1, -1)

    def dup(t):  # [θ0,θ0,θ1,θ1,...]
        return jnp.stack([t, t], axis=-1).reshape(B, N, -1)

    sins, coss = [], []
    for axis in range(3):
        p = vox[..., axis:axis + 1]
        sins.append(dup(jnp.sin(p * div_term)))
        coss.append(dup(jnp.cos(p * div_term)))
    sin_pos = jnp.concatenate(sins, axis=-1)
    cos_pos = jnp.concatenate(coss, axis=-1)
    return jnp.stack([cos_pos, sin_pos], axis=-1)  # [B, N, feature_dim, 2]


# ----------------------------------------------------------------------------
# Pure-JAX reference (mirrors the PyTorch forward) for validation.
# ----------------------------------------------------------------------------
def reference(x, source, x_pe, source_pe, params):
    B, N, d = x.shape
    S = source.shape[1]
    prec = jax.lax.Precision.HIGHEST

    def linear(t, w):
        return jnp.einsum('bnd,de->bne', t, w, precision=prec)

    def embed_rotary(t, cos, sin):
        t2 = jnp.stack([-t[..., 1::2], t[..., ::2]], axis=-1).reshape(t.shape)
        return t * cos + t2 * sin

    def ln(t, g, b):
        mu = jnp.mean(t, -1, keepdims=True)
        var = jnp.mean((t - mu) ** 2, -1, keepdims=True)
        return (t - mu) / jnp.sqrt(var + LN_EPS) * g.reshape(-1) + b.reshape(-1)

    qw = linear(x, params["wq"])
    kw = linear(source, params["wk"])
    vw = linear(source, params["wv"])
    qw = embed_rotary(qw, x_pe[..., 0], x_pe[..., 1])
    kw = embed_rotary(kw, source_pe[..., 0], source_pe[..., 1])
    qw = qw.reshape(B, N, NHEAD, DIM)
    kw = kw.reshape(B, S, NHEAD, DIM)
    vw = vw.reshape(B, S, NHEAD, DIM)
    a = jnp.einsum('nlhd,nshd->nlsh', qw, kw, precision=prec) / DIM ** 0.5
    a = jax.nn.softmax(a, axis=2)
    o = jnp.einsum('nlsh,nshd->nlhd', a, vw, precision=prec)
    message = linear(o.reshape(B, N, d), params["wm"])
    message = ln(message, params["ln1_g"], params["ln1_b"])
    cat = jnp.concatenate([x, message], axis=-1)
    h1 = jax.nn.relu(linear(cat, params["w1"]))
    message = linear(h1, params["w2"])
    message = ln(message, params["ln2_g"], params["ln2_b"])
    return x + message


if __name__ == "__main__":
    key = jax.random.PRNGKey(0)
    keys = jax.random.split(key, 16)
    B, N, S = 2, 16, 16

    x = jax.random.normal(keys[0], (B, N, D_MODEL), jnp.float32)
    source = jax.random.normal(keys[1], (B, S, D_MODEL), jnp.float32)
    xyz_q = jax.random.uniform(keys[2], (B, N, 3), jnp.float32, -1.0, 1.0)
    xyz_k = jax.random.uniform(keys[3], (B, S, 3), jnp.float32, -1.0, 1.0)
    x_pe = volpe_rotary(xyz_q, D_MODEL)          # [B, N, d, 2]
    source_pe = volpe_rotary(xyz_k, D_MODEL)     # [B, S, d, 2]

    s_d = 1.0 / math.sqrt(D_MODEL)
    s_2d = 1.0 / math.sqrt(2 * D_MODEL)
    params = {
        "wq": jax.random.normal(keys[4], (D_MODEL, D_MODEL), jnp.float32) * s_d,
        "wk": jax.random.normal(keys[5], (D_MODEL, D_MODEL), jnp.float32) * s_d,
        "wv": jax.random.normal(keys[6], (D_MODEL, D_MODEL), jnp.float32) * s_d,
        "wm": jax.random.normal(keys[7], (D_MODEL, D_MODEL), jnp.float32) * s_d,
        "w1": jax.random.normal(keys[8], (2 * D_MODEL, 2 * D_MODEL), jnp.float32) * s_2d,
        "w2": jax.random.normal(keys[9], (2 * D_MODEL, D_MODEL), jnp.float32) * s_2d,
        "ln1_g": (1.0 + 0.1 * jax.random.normal(keys[10], (1, D_MODEL), jnp.float32)),
        "ln1_b": 0.1 * jax.random.normal(keys[11], (1, D_MODEL), jnp.float32),
        "ln2_g": (1.0 + 0.1 * jax.random.normal(keys[12], (1, D_MODEL), jnp.float32)),
        "ln2_b": 0.1 * jax.random.normal(keys[13], (1, D_MODEL), jnp.float32),
    }

    # small tiles so the 3-D grid / online-softmax path is exercised: grid=(2,2,2)
    out = geometry_attention_layer(x, source, x_pe, source_pe, params, tq=8, tkv=8)
    out = jax.block_until_ready(out)

    ref = reference(x, source, x_pe, source_pe, params)
    assert out.shape == (B, N, D_MODEL) and out.dtype == jnp.float32
    # Kernel attention/MLP matmuls run on bf16 operands (f32 accumulation);
    # the reference uses f32 Precision.HIGHEST, so tolerance is loosened.
    assert jnp.allclose(out, ref, atol=5e-2, rtol=5e-2), (
        float(jnp.max(jnp.abs(out - ref))))
    print("KERNEL_OK")
</pallas_src>

<mosaic_0001>
module attributes {stable_mosaic.version = 11 : i64} {
  func.func @geom_attn_kernel(%arg0: i32, %arg1: i32, %arg2: i32, %arg3: memref<1x8x48xf32, #tpu.memory_space<vmem>>, %arg4: memref<1x4x8x12xbf16, #tpu.memory_space<vmem>>, %arg5: memref<1x4x8x12xbf16, #tpu.memory_space<vmem>>, %arg6: memref<1x4x8x12xbf16, #tpu.memory_space<vmem>>, %arg7: memref<48x48xbf16, #tpu.memory_space<vmem>>, %arg8: memref<96x96xbf16, #tpu.memory_space<vmem>>, %arg9: memref<96x48xbf16, #tpu.memory_space<vmem>>, %arg10: memref<4x48xf32, #tpu.memory_space<vmem>>, %arg11: memref<1x8x48xf32, #tpu.memory_space<vmem>>, %arg12: memref<4x8x1xf32, #tpu.memory_space<vmem>>, %arg13: memref<4x8x1xf32, #tpu.memory_space<vmem>>, %arg14: memref<4x8x12xf32, #tpu.memory_space<vmem>>) attributes {dimension_semantics = [#tpu.dimension_semantics<parallel>, #tpu.dimension_semantics<parallel>, #tpu.dimension_semantics<arbitrary>], iteration_bounds = array<i64: 2, 2, 2>, scalar_prefetch = 0 : i64, scratch_operands = 3 : i64, tpu.core_type = #tpu.core_type<tc>, window_params = [{transform_indices = @transform_0, window_bounds = array<i64: 1, 8, 48>}, {transform_indices = @transform_1, window_bounds = array<i64: 1, 4, 8, 12>}, {transform_indices = @transform_2, window_bounds = array<i64: 1, 4, 8, 12>}, {transform_indices = @transform_3, window_bounds = array<i64: 1, 4, 8, 12>}, {pipeline_mode = #tpu.pipeline_mode<synchronous>, transform_indices = @transform_4, window_bounds = array<i64: 48, 48>}, {pipeline_mode = #tpu.pipeline_mode<synchronous>, transform_indices = @transform_5, window_bounds = array<i64: 96, 96>}, {pipeline_mode = #tpu.pipeline_mode<synchronous>, transform_indices = @transform_6, window_bounds = array<i64: 96, 48>}, {pipeline_mode = #tpu.pipeline_mode<synchronous>, transform_indices = @transform_7, window_bounds = array<i64: 4, 48>}, {transform_indices = @transform_8, window_bounds = array<i64: 1, 8, 48>}]} {
    %c0_i32 = arith.constant 0 : i32
    %0 = arith.cmpi eq, %arg2, %c0_i32 : i32
    %1 = arith.extui %0 : i1 to i32
    %c0_i32_0 = arith.constant 0 : i32
    %2 = arith.cmpi ne, %1, %c0_i32_0 : i32
    scf.if %2 {
      %cst_34 = arith.constant 0xFF800000 : f32
      %36 = vector.broadcast %cst_34 : f32 to vector<4x8x1xf32>
      %c0_35 = arith.constant 0 : index
      %c0_36 = arith.constant 0 : index
      %c0_37 = arith.constant 0 : index
      %37 = vector.load %arg12[%c0_35, %c0_36, %c0_37] : memref<4x8x1xf32, #tpu.memory_space<vmem>>, vector<4x8x1xf32>
      tpu.vector_store %arg12[%c0_35, %c0_36, %c0_37], %36 {strides = array<i32>} : memref<4x8x1xf32, #tpu.memory_space<vmem>>, vector<4x8x1xf32>,
      %cst_38 = arith.constant 0.000000e+00 : f32
      %38 = vector.broadcast %cst_38 : f32 to vector<4x8x1xf32>
      %c0_39 = arith.constant 0 : index
      %c0_40 = arith.constant 0 : index
      %c0_41 = arith.constant 0 : index
      %39 = vector.load %arg13[%c0_39, %c0_40, %c0_41] : memref<4x8x1xf32, #tpu.memory_space<vmem>>, vector<4x8x1xf32>
      tpu.vector_store %arg13[%c0_39, %c0_40, %c0_41], %38 {strides = array<i32>} : memref<4x8x1xf32, #tpu.memory_space<vmem>>, vector<4x8x1xf32>,
      %cst_42 = arith.constant 0.000000e+00 : f32
      %40 = vector.broadcast %cst_42 : f32 to vector<4x8x12xf32>
      %c0_43 = arith.constant 0 : index
      %c0_44 = arith.constant 0 : index
      %c0_45 = arith.constant 0 : index
      %41 = vector.load %arg14[%c0_43, %c0_44, %c0_45] : memref<4x8x12xf32, #tpu.memory_space<vmem>>, vector<4x8x12xf32>
      tpu.vector_store %arg14[%c0_43, %c0_44, %c0_45], %40 {strides = array<i32>} : memref<4x8x12xf32, #tpu.memory_space<vmem>>, vector<4x8x12xf32>,
    } else {
    }
    %c0 = arith.constant 0 : index
    %c0_1 = arith.constant 0 : index
    %c0_2 = arith.constant 0 : index
    %c0_3 = arith.constant 0 : index
    %3 = vector.load %arg4[%c0, %c0_1, %c0_2, %c0_3] : memref<1x4x8x12xbf16, #tpu.memory_space<vmem>>, vector<1x4x8x12xbf16>
    %4 = vector.shape_cast %3 : vector<1x4x8x12xbf16> to vector<4x8x12xbf16>
    %c0_4 = arith.constant 0 : index
    %c0_5 = arith.constant 0 : index
    %c0_6 = arith.constant 0 : index
    %c0_7 = arith.constant 0 : index
    %5 = vector.load %arg5[%c0_4, %c0_5, %c0_6, %c0_7] : memref<1x4x8x12xbf16, #tpu.memory_space<vmem>>, vector<1x4x8x12xbf16>
    %6 = vector.shape_cast %5 : vector<1x4x8x12xbf16> to vector<4x8x12xbf16>
    %c0_8 = arith.constant 0 : index
    %c0_9 = arith.constant 0 : index
    %c0_10 = arith.constant 0 : index
    %c0_11 = arith.constant 0 : index
    %7 = vector.load %arg6[%c0_8, %c0_9, %c0_10, %c0_11] : memref<1x4x8x12xbf16, #tpu.memory_space<vmem>>, vector<1x4x8x12xbf16>
    %8 = vector.shape_cast %7 : vector<1x4x8x12xbf16> to vector<4x8x12xbf16>
    %cst = arith.constant dense<0.000000e+00> : vector<4x8x8xf32>
    %9 = tpu.matmul %4, %6, %cst {dimension_numbers = #tpu.dot_dimension_numbers<[2], [2], [1], [1], [0, 0, 0, 1, 1, 1], [0], [0]>} : vector<4x8x12xbf16>, vector<4x8x12xbf16>, vector<4x8x8xf32> -> vector<4x8x8xf32>
    %c0_12 = arith.constant 0 : index
    %c0_13 = arith.constant 0 : index
    %c0_14 = arith.constant 0 : index
    %10 = vector.load %arg12[%c0_12, %c0_13, %c0_14] : memref<4x8x1xf32, #tpu.memory_space<vmem>>, vector<4x8x1xf32>
    %cst_15 = arith.constant dense<0xFF800000> : vector<4x8xf32>
    %11 = vector.multi_reduction <maximumf>, %9, %cst_15 [2] : vector<4x8x8xf32> to vector<4x8xf32>
    %12 = vector.shape_cast %11 : vector<4x8xf32> to vector<4x8x1xf32>
    %13 = arith.maximumf %10, %12 : vector<4x8x1xf32>
    %14 = arith.subf %10, %13 : vector<4x8x1xf32>
    %15 = math.exp %14 : vector<4x8x1xf32>
    %16 = vector.broadcast %13 : vector<4x8x1xf32> to vector<4x8x8xf32>
    %17 = arith.subf %9, %16 : vector<4x8x8xf32>
    %18 = math.exp %17 : vector<4x8x8xf32>
    %c0_16 = arith.constant 0 : index
    %c0_17 = arith.constant 0 : index
    %c0_18 = arith.constant 0 : index
    %19 = vector.load %arg13[%c0_16, %c0_17, %c0_18] : memref<4x8x1xf32, #tpu.memory_space<vmem>>, vector<4x8x1xf32>
    %20 = arith.mulf %15, %19 : vector<4x8x1xf32>
    %cst_19 = arith.constant dense<0.000000e+00> : vector<4x8xf32>
    %21 = vector.multi_reduction <add>, %18, %cst_19 [2] : vector<4x8x8xf32> to vector<4x8xf32>
    %22 = vector.shape_cast %21 : vector<4x8xf32> to vector<4x8x1xf32>
    %23 = arith.addf %20, %22 : vector<4x8x1xf32>
    %c0_20 = arith.constant 0 : index
    %c0_21 = arith.constant 0 : index
    %c0_22 = arith.constant 0 : index
    %24 = vector.load %arg13[%c0_20, %c0_21, %c0_22] : memref<4x8x1xf32, #tpu.memory_space<vmem>>, vector<4x8x1xf32>
    tpu.vector_store %arg13[%c0_20, %c0_21, %c0_22], %23 {strides = array<i32>} : memref<4x8x1xf32, #tpu.memory_space<vmem>>, vector<4x8x1xf32>,
    %25 = arith.truncf %18 : vector<4x8x8xf32> to vector<4x8x8xbf16>
    %cst_23 = arith.constant dense<0.000000e+00> : vector<4x8x12xf32>
    %26 = tpu.matmul %25, %8, %cst_23 {dimension_numbers = #tpu.dot_dimension_numbers<[2], [1], [1], [2], [0, 0, 0, 1, 1, 2], [0], [0]>} : vector<4x8x8xbf16>, vector<4x8x12xbf16>, vector<4x8x12xf32> -> vector<4x8x12xf32>
    %c0_24 = arith.constant 0 : index
    %c0_25 = arith.constant 0 : index
    %c0_26 = arith.constant 0 : index
    %27 = vector.load %arg14[%c0_24, %c0_25, %c0_26] : memref<4x8x12xf32, #tpu.memory_space<vmem>>, vector<4x8x12xf32>
    %28 = vector.broadcast %15 : vector<4x8x1xf32> to vector<4x8x12xf32>
    %29 = arith.mulf %28, %27 : vector<4x8x12xf32>
    %30 = arith.addf %29, %26 : vector<4x8x12xf32>
    %c0_27 = arith.constant 0 : index
    %c0_28 = arith.constant 0 : index
    %c0_29 = arith.constant 0 : index
    %31 = vector.load %arg14[%c0_27, %c0_28, %c0_29] : memref<4x8x12xf32, #tpu.memory_space<vmem>>, vector<4x8x12xf32>
    tpu.vector_store %arg14[%c0_27, %c0_28, %c0_29], %30 {strides = array<i32>} : memref<4x8x12xf32, #tpu.memory_space<vmem>>, vector<4x8x12xf32>,
    %c0_30 = arith.constant 0 : index
    %c0_31 = arith.constant 0 : index
    %c0_32 = arith.constant 0 : index
    %32 = vector.load %arg12[%c0_30, %c0_31, %c0_32] : memref<4x8x1xf32, #tpu.memory_space<vmem>>, vector<4x8x1xf32>
    tpu.vector_store %arg12[%c0_30, %c0_31, %c0_32], %13 {strides = array<i32>} : memref<4x8x1xf32, #tpu.memory_space<vmem>>, vector<4x8x1xf32>,
    %c1_i32 = arith.constant 1 : i32
    %33 = arith.cmpi eq, %arg2, %c1_i32 : i32
    %34 = arith.extui %33 : i1 to i32
    %c0_i32_33 = arith.constant 0 : i32
    %35 = arith.cmpi ne, %34, %c0_i32_33 : i32
    scf.if %35 {
      %c0_34 = arith.constant 0 : index
      %c0_35 = arith.constant 0 : index
      %c0_36 = arith.constant 0 : index
      %36 = vector.load %arg14[%c0_34, %c0_35, %c0_36] : memref<4x8x12xf32, #tpu.memory_space<vmem>>, vector<4x8x12xf32>
      %c0_37 = arith.constant 0 : index
      %c0_38 = arith.constant 0 : index
      %c0_39 = arith.constant 0 : index
      %37 = vector.load %arg13[%c0_37, %c0_38, %c0_39] : memref<4x8x1xf32, #tpu.memory_space<vmem>>, vector<4x8x1xf32>
      %38 = vector.broadcast %37 : vector<4x8x1xf32> to vector<4x8x12xf32>
      %39 = arith.divf %36, %38 : vector<4x8x12xf32>
      %40 = vector.extract_strided_slice %39 {offsets = [0, 0, 0], sizes = [1, 8, 12], strides = [1, 1, 1]} : vector<4x8x12xf32> to vector<1x8x12xf32>
      %41 = vector.shape_cast %40 : vector<1x8x12xf32> to vector<8x12xf32>
      %42 = vector.extract_strided_slice %39 {offsets = [1, 0, 0], sizes = [1, 8, 12], strides = [1, 1, 1]} : vector<4x8x12xf32> to vector<1x8x12xf32>
      %43 = vector.shape_cast %42 : vector<1x8x12xf32> to vector<8x12xf32>
      %44 = vector.extract_strided_slice %39 {offsets = [2, 0, 0], sizes = [1, 8, 12], strides = [1, 1, 1]} : vector<4x8x12xf32> to vector<1x8x12xf32>
      %45 = vector.shape_cast %44 : vector<1x8x12xf32> to vector<8x12xf32>
      %46 = vector.extract_strided_slice %39 {offsets = [3, 0, 0], sizes = [1, 8, 12], strides = [1, 1, 1]} : vector<4x8x12xf32> to vector<1x8x12xf32>
      %47 = vector.shape_cast %46 : vector<1x8x12xf32> to vector<8x12xf32>
      %48 = tpu.concatenate %41, %43, %45, %47 in 1 : vector<8x12xf32>, vector<8x12xf32>, vector<8x12xf32>, vector<8x12xf32> -> vector<8x48xf32>
      %c0_40 = arith.constant 0 : index
      %c0_41 = arith.constant 0 : index
      %49 = vector.load %arg10[%c0_40, %c0_41] : memref<4x48xf32, #tpu.memory_space<vmem>>, vector<4x48xf32>
      %50 = arith.truncf %48 : vector<8x48xf32> to vector<8x48xbf16>
      %c0_42 = arith.constant 0 : index
      %c0_43 = arith.constant 0 : index
      %51 = vector.load %arg7[%c0_42, %c0_43] : memref<48x48xbf16, #tpu.memory_space<vmem>>, vector<48x48xbf16>
      %cst_44 = arith.constant dense<0.000000e+00> : vector<8x48xf32>
      %52 = tpu.matmul %50, %51, %cst_44 {dimension_numbers = #tpu.dot_dimension_numbers<[1], [0], [0], [1], [0, 0, 1, 1], [], []>} : vector<8x48xbf16>, vector<48x48xbf16>, vector<8x48xf32> -> vector<8x48xf32>
      %53 = vector.extract_strided_slice %49 {offsets = [0, 0], sizes = [1, 48], strides = [1, 1]} : vector<4x48xf32> to vector<1x48xf32>
      %54 = vector.extract_strided_slice %49 {offsets = [1, 0], sizes = [1, 48], strides = [1, 1]} : vector<4x48xf32> to vector<1x48xf32>
      %cst_45 = arith.constant dense<0.000000e+00> : vector<8xf32>
      %55 = vector.multi_reduction <add>, %52, %cst_45 [1] : vector<8x48xf32> to vector<8xf32>
      %56 = vector.shape_cast %55 : vector<8xf32> to vector<8x1xf32>
      %cst_46 = arith.constant 4.800000e+01 : f32
      %57 = vector.broadcast %cst_46 : f32 to vector<8x1xf32>
      %58 = arith.divf %56, %57 : vector<8x1xf32>
      %59 = vector.broadcast %58 : vector<8x1xf32> to vector<8x48xf32>
      %60 = arith.subf %52, %59 : vector<8x48xf32>
      %61 = arith.mulf %60, %60 : vector<8x48xf32>
      %cst_47 = arith.constant dense<0.000000e+00> : vector<8xf32>
      %62 = vector.multi_reduction <add>, %61, %cst_47 [1] : vector<8x48xf32> to vector<8xf32>
      %63 = vector.shape_cast %62 : vector<8xf32> to vector<8x1xf32>
      %cst_48 = arith.constant 4.800000e+01 : f32
      %64 = vector.broadcast %cst_48 : f32 to vector<8x1xf32>
      %65 = arith.divf %63, %64 : vector<8x1xf32>
      %66 = vector.broadcast %58 : vector<8x1xf32> to vector<8x48xf32>
      %67 = arith.subf %52, %66 : vector<8x48xf32>
      %cst_49 = arith.constant 9.99999974E-6 : f32
      %68 = vector.broadcast %cst_49 : f32 to vector<8x1xf32>
      %69 = arith.addf %65, %68 : vector<8x1xf32>
      %70 = math.rsqrt %69 : vector<8x1xf32>
      %71 = vector.broadcast %70 : vector<8x1xf32> to vector<8x48xf32>
      %72 = arith.mulf %67, %71 : vector<8x48xf32>
      %73 = vector.broadcast %53 : vector<1x48xf32> to vector<8x48xf32>
      %74 = arith.mulf %72, %73 : vector<8x48xf32>
      %75 = vector.broadcast %54 : vector<1x48xf32> to vector<8x48xf32>
      %76 = arith.addf %74, %75 : vector<8x48xf32>
      %c0_50 = arith.constant 0 : index
      %c0_51 = arith.constant 0 : index
      %c0_52 = arith.constant 0 : index
      %77 = vector.load %arg3[%c0_50, %c0_51, %c0_52] : memref<1x8x48xf32, #tpu.memory_space<vmem>>, vector<1x8x48xf32>
      %78 = vector.shape_cast %77 : vector<1x8x48xf32> to vector<8x48xf32>
      %79 = tpu.concatenate %78, %76 in 1 : vector<8x48xf32>, vector<8x48xf32> -> vector<8x96xf32>
      %80 = arith.truncf %79 : vector<8x96xf32> to vector<8x96xbf16>
      %c0_53 = arith.constant 0 : index
      %c0_54 = arith.constant 0 : index
      %81 = vector.load %arg8[%c0_53, %c0_54] : memref<96x96xbf16, #tpu.memory_space<vmem>>, vector<96x96xbf16>
      %cst_55 = arith.constant dense<0.000000e+00> : vector<8x96xf32>
      %82 = tpu.matmul %80, %81, %cst_55 {dimension_numbers = #tpu.dot_dimension_numbers<[1], [0], [0], [1], [0, 0, 1, 1], [], []>} : vector<8x96xbf16>, vector<96x96xbf16>, vector<8x96xf32> -> vector<8x96xf32>
      %cst_56 = arith.constant 0.000000e+00 : f32
      %83 = vector.broadcast %cst_56 : f32 to vector<8x96xf32>
      %84 = arith.maximumf %82, %83 : vector<8x96xf32>
      %85 = arith.truncf %84 : vector<8x96xf32> to vector<8x96xbf16>
      %c0_57 = arith.constant 0 : index
      %c0_58 = arith.constant 0 : index
      %86 = vector.load %arg9[%c0_57, %c0_58] : memref<96x48xbf16, #tpu.memory_space<vmem>>, vector<96x48xbf16>
      %cst_59 = arith.constant dense<0.000000e+00> : vector<8x48xf32>
      %87 = tpu.matmul %85, %86, %cst_59 {dimension_numbers = #tpu.dot_dimension_numbers<[1], [0], [0], [1], [0, 0, 1, 1], [], []>} : vector<8x96xbf16>, vector<96x48xbf16>, vector<8x48xf32> -> vector<8x48xf32>
      %88 = vector.extract_strided_slice %49 {offsets = [2, 0], sizes = [1, 48], strides = [1, 1]} : vector<4x48xf32> to vector<1x48xf32>
      %89 = vector.extract_strided_slice %49 {offsets = [3, 0], sizes = [1, 48], strides = [1, 1]} : vector<4x48xf32> to vector<1x48xf32>
      %cst_60 = arith.constant dense<0.000000e+00> : vector<8xf32>
      %90 = vector.multi_reduction <add>, %87, %cst_60 [1] : vector<8x48xf32> to vector<8xf32>
      %91 = vector.shape_cast %90 : vector<8xf32> to vector<8x1xf32>
      %cst_61 = arith.constant 4.800000e+01 : f32
      %92 = vector.broadcast %cst_61 : f32 to vector<8x1xf32>
      %93 = arith.divf %91, %92 : vector<8x1xf32>
      %94 = vector.broadcast %93 : vector<8x1xf32> to vector<8x48xf32>
      %95 = arith.subf %87, %94 : vector<8x48xf32>
      %96 = arith.mulf %95, %95 : vector<8x48xf32>
      %cst_62 = arith.constant dense<0.000000e+00> : vector<8xf32>
      %97 = vector.multi_reduction <add>, %96, %cst_62 [1] : vector<8x48xf32> to vector<8xf32>
      %98 = vector.shape_cast %97 : vector<8xf32> to vector<8x1xf32>
      %cst_63 = arith.constant 4.800000e+01 : f32
      %99 = vector.broadcast %cst_63 : f32 to vector<8x1xf32>
      %100 = arith.divf %98, %99 : vector<8x1xf32>
      %101 = vector.broadcast %93 : vector<8x1xf32> to vector<8x48xf32>
      %102 = arith.subf %87, %101 : vector<8x48xf32>
      %cst_64 = arith.constant 9.99999974E-6 : f32
      %103 = vector.broadcast %cst_64 : f32 to vector<8x1xf32>
      %104 = arith.addf %100, %103 : vector<8x1xf32>
      %105 = math.rsqrt %104 : vector<8x1xf32>
      %106 = vector.broadcast %105 : vector<8x1xf32> to vector<8x48xf32>
      %107 = arith.mulf %102, %106 : vector<8x48xf32>
      %108 = vector.broadcast %88 : vector<1x48xf32> to vector<8x48xf32>
      %109 = arith.mulf %107, %108 : vector<8x48xf32>
      %110 = vector.broadcast %89 : vector<1x48xf32> to vector<8x48xf32>
      %111 = arith.addf %109, %110 : vector<8x48xf32>
      %112 = arith.addf %78, %111 : vector<8x48xf32>
      %c0_65 = arith.constant 0 : index
      %c0_66 = arith.constant 0 : index
      %c0_67 = arith.constant 0 : index
      %113 = vector.load %arg11[%c0_65, %c0_66, %c0_67] : memref<1x8x48xf32, #tpu.memory_space<vmem>>, vector<1x8x48xf32>
      %114 = vector.shape_cast %113 : vector<1x8x48xf32> to vector<8x48xf32>
      %115 = vector.shape_cast %112 : vector<8x48xf32> to vector<1x8x48xf32>
      tpu.vector_store %arg11[%c0_65, %c0_66, %c0_67], %115 {strides = array<i32>} : memref<1x8x48xf32, #tpu.memory_space<vmem>>, vector<1x8x48xf32>,
    } else {
    }
    return
  }
  func.func @transform_0(%arg0: i32, %arg1: i32, %arg2: i32) -> (i32, i32, i32) {
    %c0_i32 = arith.constant 0 : i32
    %c0_i32_0 = arith.constant 0 : i32
    return %arg0, %arg1, %c0_i32 : i32, i32, i32
  }
  func.func @transform_1(%arg0: i32, %arg1: i32, %arg2: i32) -> (i32, i32, i32, i32) {
    %c0_i32 = arith.constant 0 : i32
    %c0_i32_0 = arith.constant 0 : i32
    %c0_i32_1 = arith.constant 0 : i32
    return %arg0, %c0_i32, %arg1, %c0_i32_0 : i32, i32, i32, i32
  }
  func.func @transform_2(%arg0: i32, %arg1: i32, %arg2: i32) -> (i32, i32, i32, i32) {
    %c0_i32 = arith.constant 0 : i32
    %c0_i32_0 = arith.constant 0 : i32
    %c0_i32_1 = arith.constant 0 : i32
    return %arg0, %c0_i32, %arg2, %c0_i32_0 : i32, i32, i32, i32
  }
  func.func @transform_3(%arg0: i32, %arg1: i32, %arg2: i32) -> (i32, i32, i32, i32) {
    %c0_i32 = arith.constant 0 : i32
    %c0_i32_0 = arith.constant 0 : i32
    %c0_i32_1 = arith.constant 0 : i32
    return %arg0, %c0_i32, %arg2, %c0_i32_0 : i32, i32, i32, i32
  }
  func.func @transform_4(%arg0: i32, %arg1: i32, %arg2: i32) -> (i32, i32) {
    %c0_i32 = arith.constant 0 : i32
    %c0_i32_0 = arith.constant 0 : i32
    %c0_i32_1 = arith.constant 0 : i32
    return %c0_i32, %c0_i32_0 : i32, i32
  }
  func.func @transform_5(%arg0: i32, %arg1: i32, %arg2: i32) -> (i32, i32) {
    %c0_i32 = arith.constant 0 : i32
    %c0_i32_0 = arith.constant 0 : i32
    %c0_i32_1 = arith.constant 0 : i32
    return %c0_i32, %c0_i32_0 : i32, i32
  }
  func.func @transform_6(%arg0: i32, %arg1: i32, %arg2: i32) -> (i32, i32) {
    %c0_i32 = arith.constant 0 : i32
    %c0_i32_0 = arith.constant 0 : i32
    %c0_i32_1 = arith.constant 0 : i32
    return %c0_i32, %c0_i32_0 : i32, i32
  }
  func.func @transform_7(%arg0: i32, %arg1: i32, %arg2: i32) -> (i32, i32) {
    %c0_i32 = arith.constant 0 : i32
    %c0_i32_0 = arith.constant 0 : i32
    %c0_i32_1 = arith.constant 0 : i32
    return %c0_i32, %c0_i32_0 : i32, i32
  }
  func.func @transform_8(%arg0: i32, %arg1: i32, %arg2: i32) -> (i32, i32, i32) {
    %c0_i32 = arith.constant 0 : i32
    %c0_i32_0 = arith.constant 0 : i32
    return %arg0, %arg1, %c0_i32 : i32, i32, i32
  }
}

</mosaic_0001>

<llo_original>
// kernel: tpu_custom_call.1
$region0: #{tpu_custom_call.1}
  #allocation0 [shape = 'u32[]', space=smem, size = 0x4, offset = 0x4, fixed_abs, tag = 'smem constant byte address 0x4 - core index']
  #allocation1 [shape = 'u32[144,128]{1,0:T(1,128)}', space=vmem, size = 0x12000, scoped, tag = 'internal scratch']
  #allocation2 [shape = 'f32[4,8,1]{2,1,0:T(8,128)}', space=vmem, size = 0x4000, scoped, tag = 'scratch operand']
  #allocation3 [shape = 'f32[4,8,1]{2,1,0:T(8,128)}', space=vmem, size = 0x4000, scoped, tag = 'scratch operand']
  #allocation4 [shape = 'f32[4,8,12]{2,1,0:T(8,128)}', space=vmem, size = 0x4000, scoped, tag = 'scratch operand']
  %s0 = inlined_call_operand.vmem [shape: f32[2,16,48], index: 0, kind: input, shape index: {}]
  %s1 = inlined_call_operand.vmem [shape: bf16[2,4,16,12], index: 1, kind: input, shape index: {}]
  %s2 = inlined_call_operand.vmem [shape: bf16[2,4,16,12], index: 2, kind: input, shape index: {}]
  %s3 = inlined_call_operand.vmem [shape: bf16[2,4,16,12], index: 3, kind: input, shape index: {}]
  %s4 = inlined_call_operand.vmem [shape: bf16[48,48], index: 4, kind: input, shape index: {}]
  %s5 = inlined_call_operand.vmem [shape: bf16[96,96], index: 5, kind: input, shape index: {}]
  %s6 = inlined_call_operand.vmem [shape: bf16[96,48], index: 6, kind: input, shape index: {}]
  %s7 = inlined_call_operand.vmem [shape: f32[4,48], index: 7, kind: input, shape index: {}]
  %s8 = inlined_call_operand.hbm [shape: f32[2,16,48], index: 8, kind: output, shape index: {}]
  %s9 = sld [smem:[#allocation0]]
  $region196: #{tpu_custom_call.1} parent=0
    _
  %s11 = ssub.s32 1, %s9
  %s12 = scalar_select 0, %s11, %s9
  $region1: #{tpu_custom_call.1} parent=0
    #allocation5 [shape = 'u8[16384]{0}', space=vmem, size = 0x4000, scoped, tag = 'input window, operand 1']
    #allocation6 [shape = 'u8[16384]{0}', space=vmem, size = 0x4000, scoped, tag = 'input window, operand 2']
    #allocation7 [shape = 'u8[16384]{0}', space=vmem, size = 0x4000, scoped, tag = 'input window, operand 3']
    #allocation8 [shape = 'u8[8192]{0}', space=vmem, size = 0x2000, scoped, tag = 'output window, operand 0']
    #allocation9 [shape = 's32[2]{0}', space=sflag, size = 0x8, scoped, tag = 'scoped memory for tpu_custom_call.1']
    %13 = vsyncpa [#allocation9], 0
    %s14 = scalar_lea.sflag [#allocation9], 1
    %15 = vsyncpa %s14, 0
    loop: start=0, step=1, limit=10
    $region2: #{tpu_custom_call.1} parent=1 // loop_pre_header
      _
    $region3: #{tpu_custom_call.1} parent=1 // loop_header
      %s17 = sphi 0, %s21
      %p18 = scmp.ge.s32.totalorder %s17, 10
      %s24 = sphi 0, %s43
      %s25 = sphi 0, %s39
      %s26 = sphi 0, %s35
      %s27 = sphi 0, %s24
      %s28 = sphi 0, %s25
      %s29 = sphi 0, %s26
      %s30 = sphi 0, %s27
      %s31 = sphi 0, %s28
      %s32 = sphi 0, %s29
      %s48 = sphi 0, %s50
      %s51 = sphi 0, %s48
      %s52 = sphi 0, %s51
      %s68 = sphi 0, %s52
      %s76 = sphi 0, %s78
      %s79 = sphi 0, %s76
      %s80 = sphi 0, %s79
      %s96 = sphi 0, %s80
      %s104 = sphi 0, %s106
      %s107 = sphi 0, %s104
      %s108 = sphi 0, %s107
      %s124 = sphi 0, %s108
      %s132 = sphi 0, %s134
      %s135 = sphi 0, %s132
      %s136 = sphi 0, %s135
      %s152 = sphi 0, %s136
      %s156 = sphi 0, %s156
      %s158 = sphi 0, %s156
      %s159 = sphi 0, %s158
      %s173 = sphi 0, %s159
      %s177 = sphi 0, %s177
      %s179 = sphi 0, %s177
      %s180 = sphi 0, %s179
      %s194 = sphi 0, %s180
      %s198 = sphi 0, %s198
      %s200 = sphi 0, %s198
      %s201 = sphi 0, %s200
      %s215 = sphi 0, %s201
      %s219 = sphi 0, %s219
      %s221 = sphi 0, %s219
      %s222 = sphi 0, %s221
      %s236 = sphi 0, %s222
      %s244 = sphi 0, %s246
      %s247 = sphi 0, %s244
      %s248 = sphi 0, %s247
      %s264 = sphi 0, %s248
    $region4: #{tpu_custom_call.1} parent=1 // loop_header_branch
      %20 = sbr.rel (%p18) target = $region8
    $region5: #{tpu_custom_call.1} parent=1 // loop_body
      %s22 = ssub.s32 %s17, 1
      %s23 = ssub.s32 %s17, 2
      %s33 = sadd.s32 1, %s26
      %p34 = scmp.ge.s32.totalorder %s33, 2
      %s35 = scalar_select %p34, 0, %s33
      %s36 = sadd.s32 1, %s25
      %s37 = scalar_select %p34, %s36, %s25
      %p38 = scmp.ge.s32.totalorder %s37, 2
      %s39 = scalar_select %p38, 0, %s37
      %s40 = sadd.s32 1, %s24
      %s41 = scalar_select %p38, %s40, %s24
      %p42 = scmp.ge.s32.totalorder %s41, 2
      %s43 = scalar_select %p42, 0, %s41
      %s44 = ssub.s32 %s24, %s43
      %s45 = ssub.s32 %s25, %s39
      %s46 = sor.u32 %s44, %s45
      %p47 = scmp.eq.s32.totalorder %s46, 0
      %s49 = sadd.s32 %s48, 1
      %s50 = scalar_select %p47, %s48, %s49
      %p53 = pneg %p47
      %p54 = scmp.eq.s32.totalorder %s17, 7
      %p55 = por %p53, %p54
      %p56 = scmp.ne.s32.totalorder %s48, %s51
      %p57 = scmp.eq.s32.totalorder %s17, 0
      %p58 = por %p56, %p57
      %p59 = scmp.ne.s32.totalorder %s48, %s51
      %p60 = scmp.eq.s32.totalorder %s22, 7
      %p61 = por %p59, %p60
      %p62 = scmp.ne.s32.totalorder %s51, %s52
      %p63 = scmp.eq.s32.totalorder %s22, 0
      %p64 = por %p62, %p63
      %p65 = scmp.ne.s32.totalorder %s51, %s52
      %p66 = scmp.eq.s32.totalorder %s23, 7
      %p67 = por %p65, %p66
      %p69 = scmp.ne.s32.totalorder %s52, %s68
      %p70 = scmp.eq.s32.totalorder %s23, 0
      %p71 = por %p69, %p70
      %s72 = ssub.s32 %s24, %s43
      %s73 = ssub.s32 %s25, %s39
      %s74 = sor.u32 %s72, %s73
      %p75 = scmp.eq.s32.totalorder %s74, 0
      %s77 = sadd.s32 %s76, 1
      %s78 = scalar_select %p75, %s76, %s77
      %p81 = pneg %p75
      %p82 = scmp.eq.s32.totalorder %s17, 7
      %p83 = por %p81, %p82
      %p84 = scmp.ne.s32.totalorder %s76, %s79
      %p85 = scmp.eq.s32.totalorder %s17, 0
      %p86 = por %p84, %p85
      %p87 = scmp.ne.s32.totalorder %s76, %s79
      %p88 = scmp.eq.s32.totalorder %s22, 7
      %p89 = por %p87, %p88
      %p90 = scmp.ne.s32.totalorder %s79, %s80
      %p91 = scmp.eq.s32.totalorder %s22, 0
      %p92 = por %p90, %p91
      %p93 = scmp.ne.s32.totalorder %s79, %s80
      %p94 = scmp.eq.s32.totalorder %s23, 7
      %p95 = por %p93, %p94
      %p97 = scmp.ne.s32.totalorder %s80, %s96
      %p98 = scmp.eq.s32.totalorder %s23, 0
      %p99 = por %p97, %p98
      %s100 = ssub.s32 %s24, %s43
      %s101 = ssub.s32 %s26, %s35
      %s102 = sor.u32 %s100, %s101
      %p103 = scmp.eq.s32.totalorder %s102, 0
      %s105 = sadd.s32 %s104, 1
      %s106 = scalar_select %p103, %s104, %s105
      %p109 = pneg %p103
      %p110 = scmp.eq.s32.totalorder %s17, 7
      %p111 = por %p109, %p110
      %p112 = scmp.ne.s32.totalorder %s104, %s107
      %p113 = scmp.eq.s32.totalorder %s17, 0
      %p114 = por %p112, %p113
      %p115 = scmp.ne.s32.totalorder %s104, %s107
      %p116 = scmp.eq.s32.totalorder %s22, 7
      %p117 = por %p115, %p116
      %p118 = scmp.ne.s32.totalorder %s107, %s108
      %p119 = scmp.eq.s32.totalorder %s22, 0
      %p120 = por %p118, %p119
      %p121 = scmp.ne.s32.totalorder %s107, %s108
      %p122 = scmp.eq.s32.totalorder %s23, 7
      %p123 = por %p121, %p122
      %p125 = scmp.ne.s32.totalorder %s108, %s124
      %p126 = scmp.eq.s32.totalorder %s23, 0
      %p127 = por %p125, %p126
      %s128 = ssub.s32 %s24, %s43
      %s129 = ssub.s32 %s26, %s35
      %s130 = sor.u32 %s128, %s129
      %p131 = scmp.eq.s32.totalorder %s130, 0
      %s133 = sadd.s32 %s132, 1
      %s134 = scalar_select %p131, %s132, %s133
      %p137 = pneg %p131
      %p138 = scmp.eq.s32.totalorder %s17, 7
      %p139 = por %p137, %p138
      %p140 = scmp.ne.s32.totalorder %s132, %s135
      %p141 = scmp.eq.s32.totalorder %s17, 0
      %p142 = por %p140, %p141
      %p143 = scmp.ne.s32.totalorder %s132, %s135
      %p144 = scmp.eq.s32.totalorder %s22, 7
      %p145 = por %p143, %p144
      %p146 = scmp.ne.s32.totalorder %s135, %s136
      %p147 = scmp.eq.s32.totalorder %s22, 0
      %p148 = por %p146, %p147
      %p149 = scmp.ne.s32.totalorder %s135, %s136
      %p150 = scmp.eq.s32.totalorder %s23, 7
      %p151 = por %p149, %p150
      %p153 = scmp.ne.s32.totalorder %s136, %s152
      %p154 = scmp.eq.s32.totalorder %s23, 0
      %p155 = por %p153, %p154
      %s157 = sadd.s32 %s156, 1
      %p160 = scmp.eq.s32.totalorder %s17, 7
      %p161 = scmp.ne.s32.totalorder %s156, %s158
      %p162 = scmp.eq.s32.totalorder %s17, 0
      %p163 = por %p161, %p162
      %p164 = scmp.ne.s32.totalorder %s156, %s158
      %p165 = scmp.eq.s32.totalorder %s22, 7
      %p166 = por %p164, %p165
      %p167 = scmp.ne.s32.totalorder %s158, %s159
      %p168 = scmp.eq.s32.totalorder %s22, 0
      %p169 = por %p167, %p168
      %p170 = scmp.ne.s32.totalorder %s158, %s159
      %p171 = scmp.eq.s32.totalorder %s23, 7
      %p172 = por %p170, %p171
      %p174 = scmp.ne.s32.totalorder %s159, %s173
      %p175 = scmp.eq.s32.totalorder %s23, 0
      %p176 = por %p174, %p175
      %s178 = sadd.s32 %s177, 1
      %p181 = scmp.eq.s32.totalorder %s17, 7
      %p182 = scmp.ne.s32.totalorder %s177, %s179
      %p183 = scmp.eq.s32.totalorder %s17, 0
      %p184 = por %p182, %p183
      %p185 = scmp.ne.s32.totalorder %s177, %s179
      %p186 = scmp.eq.s32.totalorder %s22, 7
      %p187 = por %p185, %p186
      %p188 = scmp.ne.s32.totalorder %s179, %s180
      %p189 = scmp.eq.s32.totalorder %s22, 0
      %p190 = por %p188, %p189
      %p191 = scmp.ne.s32.totalorder %s179, %s180
      %p192 = scmp.eq.s32.totalorder %s23, 7
      %p193 = por %p191, %p192
      %p195 = scmp.ne.s32.totalorder %s180, %s194
      %p196 = scmp.eq.s32.totalorder %s23, 0
      %p197 = por %p195, %p196
      %s199 = sadd.s32 %s198, 1
      %p202 = scmp.eq.s32.totalorder %s17, 7
      %p203 = scmp.ne.s32.totalorder %s198, %s200
      %p204 = scmp.eq.s32.totalorder %s17, 0
      %p205 = por %p203, %p204
      %p206 = scmp.ne.s32.totalorder %s198, %s200
      %p207 = scmp.eq.s32.totalorder %s22, 7
      %p208 = por %p206, %p207
      %p209 = scmp.ne.s32.totalorder %s200, %s201
      %p210 = scmp.eq.s32.totalorder %s22, 0
      %p211 = por %p209, %p210
      %p212 = scmp.ne.s32.totalorder %s200, %s201
      %p213 = scmp.eq.s32.totalorder %s23, 7
      %p214 = por %p212, %p213
      %p216 = scmp.ne.s32.totalorder %s201, %s215
      %p217 = scmp.eq.s32.totalorder %s23, 0
      %p218 = por %p216, %p217
      %s220 = sadd.s32 %s219, 1
      %p223 = scmp.eq.s32.totalorder %s17, 7
      %p224 = scmp.ne.s32.totalorder %s219, %s221
      %p225 = scmp.eq.s32.totalorder %s17, 0
      %p226 = por %p224, %p225
      %p227 = scmp.ne.s32.totalorder %s219, %s221
      %p228 = scmp.eq.s32.totalorder %s22, 7
      %p229 = por %p227, %p228
      %p230 = scmp.ne.s32.totalorder %s221, %s222
      %p231 = scmp.eq.s32.totalorder %s22, 0
      %p232 = por %p230, %p231
      %p233 = scmp.ne.s32.totalorder %s221, %s222
      %p234 = scmp.eq.s32.totalorder %s23, 7
      %p235 = por %p233, %p234
      %p237 = scmp.ne.s32.totalorder %s222, %s236
      %p238 = scmp.eq.s32.totalorder %s23, 0
      %p239 = por %p237, %p238
      %s240 = ssub.s32 %s24, %s43
      %s241 = ssub.s32 %s25, %s39
      %s242 = sor.u32 %s240, %s241
      %p243 = scmp.eq.s32.totalorder %s242, 0
      %s245 = sadd.s32 %s244, 1
      %s246 = scalar_select %p243, %s244, %s245
      %p249 = pneg %p243
      %p250 = scmp.eq.s32.totalorder %s17, 7
      %p251 = por %p249, %p250
      %p252 = scmp.ne.s32.totalorder %s244, %s247
      %p253 = scmp.eq.s32.totalorder %s17, 0
      %p254 = por %p252, %p253
      %p255 = scmp.ne.s32.totalorder %s244, %s247
      %p256 = scmp.eq.s32.totalorder %s22, 7
      %p257 = por %p255, %p256
      %p258 = scmp.ne.s32.totalorder %s247, %s248
      %p259 = scmp.eq.s32.totalorder %s22, 0
      %p260 = por %p258, %p259
      %p261 = scmp.ne.s32.totalorder %s247, %s248
      %p262 = scmp.eq.s32.totalorder %s23, 7
      %p263 = por %p261, %p262
      %p265 = scmp.ne.s32.totalorder %s248, %s264
      %p266 = scmp.eq.s32.totalorder %s23, 0
      %p267 = por %p265, %p266
      %p268 = scmp.le.s32.totalorder 1, %s17
      %p269 = scmp.lt.s32.totalorder %s17, 9
      %p270 = pnand %p268, %p269
      %p271 = pneg %p270
      // Predicated region
      $region9: #{tpu_custom_call.1} parent=5 // pred_check
        _
      $region10: #{tpu_custom_call.1} parent=5 // pred_check_branch
        %273 = sbr.rel (%p270) target = $region12
      $region11: #{tpu_custom_call.1} parent=5 // pred_region
        %s274 = ssub.s32 %s17, 1
        // Predicated region
        $region13: #{tpu_custom_call.1} parent=11 // pred_check
          %p275 = pneg %p169
        $region14: #{tpu_custom_call.1} parent=11 // pred_check_branch
          %277 = sbr.rel (%p275) target = $region16
        $region15: #{tpu_custom_call.1} parent=11 // pred_region
          _
        $region16: #{tpu_custom_call.1} parent=11 // pred_fallthru
          _
        // Predicated region
        $region17: #{tpu_custom_call.1} parent=11 // pred_check
          %p278 = pneg %p190
        $region18: #{tpu_custom_call.1} parent=11 // pred_check_branch
          %280 = sbr.rel (%p278) target = $region20
        $region19: #{tpu_custom_call.1} parent=11 // pred_region
          _
        $region20: #{tpu_custom_call.1} parent=11 // pred_fallthru
          _
        // Predicated region
        $region21: #{tpu_custom_call.1} parent=11 // pred_check
          %p281 = pneg %p211
        $region22: #{tpu_custom_call.1} parent=11 // pred_check_branch
          %283 = sbr.rel (%p281) target = $region24
        $region23: #{tpu_custom_call.1} parent=11 // pred_region
          _
        $region24: #{tpu_custom_call.1} parent=11 // pred_fallthru
          _
        // Predicated region
        $region25: #{tpu_custom_call.1} parent=11 // pred_check
          %p284 = pneg %p232
        $region26: #{tpu_custom_call.1} parent=11 // pred_check_branch
          %286 = sbr.rel (%p284) target = $region28
        $region27: #{tpu_custom_call.1} parent=11 // pred_region
          _
        $region28: #{tpu_custom_call.1} parent=11 // pred_fallthru
          _
      $region12: #{tpu_custom_call.1} parent=5 // pred_fallthru
        _
      %p287 = scmp.lt.s32.totalorder %s17, 8
      // Predicated region
      $region29: #{tpu_custom_call.1} parent=5 // pred_check
        %p288 = pneg %p287
      $region30: #{tpu_custom_call.1} parent=5 // pred_check_branch
        %290 = sbr.rel (%p288) target = $region32
      $region31: #{tpu_custom_call.1} parent=5 // pred_region
        // Predicated region
        $region33: #{tpu_custom_call.1} parent=31 // pred_check
          %p291 = pneg %p58
        $region34: #{tpu_custom_call.1} parent=31 // pred_check_branch
          %293 = sbr.rel (%p291) target = $region36
        $region35: #{tpu_custom_call.1} parent=31 // pred_region
          %p294 = scmp.lt.s32.totalorder %s24, 1
          %s295 = scalar_select %p294, %s24, 1
          %p296 = scmp.lt.s32.totalorder %s25, 1
          %s297 = scalar_select %p296, %s25, 1
          %s298 = smul.addr %s295, 2
          %s299 = sadd.s32 %s297, %s298
          %s300 = smul.addr %s299, 8
          %s301 = scalar_lea.vmem %s0, %s300
        $region36: #{tpu_custom_call.1} parent=31 // pred_fallthru
          _
        // Predicated region
        $region37: #{tpu_custom_call.1} parent=31 // pred_check
          %p302 = pneg %p86
        $region38: #{tpu_custom_call.1} parent=31 // pred_check_branch
          %304 = sbr.rel (%p302) target = $region40
        $region39: #{tpu_custom_call.1} parent=31 // pred_region
          %s305 = sand.u32 %s76, 1
          %s306 = sand.u32 %s76, 1
          %s307 = smul.addr %s306, 16
          %s308 = scalar_lea.vmem [#allocation5], %s307
          %s309 = smul.addr %s24, 8
          %s310 = sadd.s32 %s25, %s309
          %s311 = smul.addr %s310, 4
          %s312 = scalar_lea.vmem %s1, %s311
          // Predicated region
          $region41: #{tpu_custom_call.1} parent=39 // pred_check
            _
          $region42: #{tpu_custom_call.1} parent=39 // pred_check_branch
            %314 = sbr.rel (0) target = $region44
          $region43: #{tpu_custom_call.1} parent=39 // pred_region
            // Predicated region
            $region45: #{tpu_custom_call.1} parent=43 // pred_check
              _
            $region46: #{tpu_custom_call.1} parent=43 // pred_check_branch
              %316 = sbr.rel target = $region48
            $region47: #{tpu_custom_call.1} parent=43 // pred_region
              // Predicated region
              $region60: #{tpu_custom_call.1} parent=47 // pred_check
                _
              $region61: #{tpu_custom_call.1} parent=47 // pred_check_branch
                %337 = sbr.rel (0) target = $region63
              $region62: #{tpu_custom_call.1} parent=47 // pred_region
                loop: start=0, step=1, limit=1
                $region64: #{tpu_custom_call.1} parent=62 // loop_pre_header
                  _
                $region65: #{tpu_custom_call.1} parent=62 // loop_header
                  %s339 = sphi 0, %s343
                  %p340 = scmp.ge.s32.totalorder %s339, 1
                  %s344 = sphi %s312, %s312
                  %s345 = sphi %s308, %s308
                $region66: #{tpu_custom_call.1} parent=62 // loop_header_branch
                  %342 = sbr.rel (%p340) target = $region70
                $region67: #{tpu_custom_call.1} parent=62 // loop_body
                  _
                $region68: #{tpu_custom_call.1} parent=62 // loop_footer
                  %s343 = sadd.s32 1, %s339
                $region69: #{tpu_custom_call.1} parent=62 // loop_footer_branch
                  %338 = sbr.rel target = $region65
                $region70: #{tpu_custom_call.1} parent=62 // loop_exit
                  _
                loop: start=0, step=1, limit=1
                $region71: #{tpu_custom_call.1} parent=62 // loop_pre_header
                  _
                $region72: #{tpu_custom_call.1} parent=62 // loop_header
                  %s348 = sphi 0, %s352
                  %p349 = scmp.ge.s32.totalorder %s348, 1
                  %s353 = sphi %s312, %s312
                  %s354 = sphi %s308, %s308
                $region73: #{tpu_custom_call.1} parent=62 // loop_header_branch
                  %351 = sbr.rel (%p349) target = $region77
                $region74: #{tpu_custom_call.1} parent=62 // loop_body
                  %v355 = vld [vmem:[%s353] sm:$0xf]
                  %356 = vst [vmem:[%s354] sm:$0xf] %v355
                  %v357 = vld [vmem:[%s353 + $0x8] sm:$0xf]
                  %358 = vst [vmem:[%s354 + $0x4] sm:$0xf] %v357
                  %v359 = vld [vmem:[%s353 + $0x10] sm:$0xf]
                  %360 = vst [vmem:[%s354 + $0x8] sm:$0xf] %v359
                  %v361 = vld [vmem:[%s353 + $0x18] sm:$0xf]
                  %362 = vst [vmem:[%s354 + $0xc] sm:$0xf] %v361
                $region75: #{tpu_custom_call.1} parent=62 // loop_footer
                  %s352 = sadd.s32 1, %s348
                $region76: #{tpu_custom_call.1} parent=62 // loop_footer_branch
                  %347 = sbr.rel target = $region72
                $region77: #{tpu_custom_call.1} parent=62 // loop_exit
                  _
              $region63: #{tpu_custom_call.1} parent=47 // pred_fallthru
                _
            $region48: #{tpu_custom_call.1} parent=43 // pred_fallthru
              _
            // Predicated region
            $region49: #{tpu_custom_call.1} parent=43 // pred_check
              _
            $region50: #{tpu_custom_call.1} parent=43 // pred_check_branch
              %318 = sbr.rel (0) target = $region52
            $region51: #{tpu_custom_call.1} parent=43 // pred_region
              loop: start=0, step=1, limit=1
              $region53: #{tpu_custom_call.1} parent=51 // loop_pre_header
                _
              $region54: #{tpu_custom_call.1} parent=51 // loop_header
                %s321 = sphi 0, %s325
                %p322 = scmp.ge.s32.totalorder %s321, 1
                %s326 = sphi %s312, %s312
                %s327 = sphi %s308, %s308
              $region55: #{tpu_custom_call.1} parent=51 // loop_header_branch
                %324 = sbr.rel (%p322) target = $region59
              $region56: #{tpu_custom_call.1} parent=51 // loop_body
                %v328 = vld [vmem:[%s326] sm:$0xf]
                %329 = vst [vmem:[%s327] sm:$0xf] %v328
                %v330 = vld [vmem:[%s326 + $0x8] sm:$0xf]
                %331 = vst [vmem:[%s327 + $0x4] sm:$0xf] %v330
                %v332 = vld [vmem:[%s326 + $0x10] sm:$0xf]
                %333 = vst [vmem:[%s327 + $0x8] sm:$0xf] %v332
                %v334 = vld [vmem:[%s326 + $0x18] sm:$0xf]
                %335 = vst [vmem:[%s327 + $0xc] sm:$0xf] %v334
              $region57: #{tpu_custom_call.1} parent=51 // loop_footer
                %s325 = sadd.s32 1, %s321
              $region58: #{tpu_custom_call.1} parent=51 // loop_footer_branch
                %320 = sbr.rel target = $region54
              $region59: #{tpu_custom_call.1} parent=51 // loop_exit
                _
            $region52: #{tpu_custom_call.1} parent=43 // pred_fallthru
              _
          $region44: #{tpu_custom_call.1} parent=39 // pred_fallthru
            _
          %363 = vnop
        $region40: #{tpu_custom_call.1} parent=31 // pred_fallthru
          _
        // Predicated region
        $region78: #{tpu_custom_call.1} parent=31 // pred_check
          %p364 = pneg %p114
        $region79: #{tpu_custom_call.1} parent=31 // pred_check_branch
          %366 = sbr.rel (%p364) target = $region81
        $region80: #{tpu_custom_call.1} parent=31 // pred_region
          %s367 = sand.u32 %s104, 1
          %s368 = sand.u32 %s104, 1
          %s369 = smul.addr %s368, 16
          %s370 = scalar_lea.vmem [#allocation6], %s369
          %s371 = smul.addr %s24, 8
          %s372 = sadd.s32 %s26, %s371
          %s373 = smul.addr %s372, 4
          %s374 = scalar_lea.vmem %s2, %s373
          // Predicated region
          $region82: #{tpu_custom_call.1} parent=80 // pred_check
            _
          $region83: #{tpu_custom_call.1} parent=80 // pred_check_branch
            %376 = sbr.rel (0) target = $region85
          $region84: #{tpu_custom_call.1} parent=80 // pred_region
            // Predicated region
            $region86: #{tpu_custom_call.1} parent=84 // pred_check
              _
            $region87: #{tpu_custom_call.1} parent=84 // pred_check_branch
              %378 = sbr.rel target = $region89
            $region88: #{tpu_custom_call.1} parent=84 // pred_region
              // Predicated region
              $region101: #{tpu_custom_call.1} parent=88 // pred_check
                _
              $region102: #{tpu_custom_call.1} parent=88 // pred_check_branch
                %399 = sbr.rel (0) target = $region104
              $region103: #{tpu_custom_call.1} parent=88 // pred_region
                loop: start=0, step=1, limit=1
                $region105: #{tpu_custom_call.1} parent=103 // loop_pre_header
                  _
                $region106: #{tpu_custom_call.1} parent=103 // loop_header
                  %s401 = sphi 0, %s405
                  %p402 = scmp.ge.s32.totalorder %s401, 1
                  %s406 = sphi %s374, %s374
                  %s407 = sphi %s370, %s370
                $region107: #{tpu_custom_call.1} parent=103 // loop_header_branch
                  %404 = sbr.rel (%p402) target = $region111
                $region108: #{tpu_custom_call.1} parent=103 // loop_body
                  _
                $region109: #{tpu_custom_call.1} parent=103 // loop_footer
                  %s405 = sadd.s32 1, %s401
                $region110: #{tpu_custom_call.1} parent=103 // loop_footer_branch
                  %400 = sbr.rel target = $region106
                $region111: #{tpu_custom_call.1} parent=103 // loop_exit
                  _
                loop: start=0, step=1, limit=1
                $region112: #{tpu_custom_call.1} parent=103 // loop_pre_header
                  _
                $region113: #{tpu_custom_call.1} parent=103 // loop_header
                  %s410 = sphi 0, %s414
                  %p411 = scmp.ge.s32.totalorder %s410, 1
                  %s415 = sphi %s374, %s374
                  %s416 = sphi %s370, %s370
                $region114: #{tpu_custom_call.1} parent=103 // loop_header_branch
                  %413 = sbr.rel (%p411) target = $region118
                $region115: #{tpu_custom_call.1} parent=103 // loop_body
                  %v417 = vld [vmem:[%s415] sm:$0xf]
                  %418 = vst [vmem:[%s416] sm:$0xf] %v417
                  %v419 = vld [vmem:[%s415 + $0x8] sm:$0xf]
                  %420 = vst [vmem:[%s416 + $0x4] sm:$0xf] %v419
                  %v421 = vld [vmem:[%s415 + $0x10] sm:$0xf]
                  %422 = vst [vmem:[%s416 + $0x8] sm:$0xf] %v421
                  %v423 = vld [vmem:[%s415 + $0x18] sm:$0xf]
                  %424 = vst [vmem:[%s416 + $0xc] sm:$0xf] %v423
                $region116: #{tpu_custom_call.1} parent=103 // loop_footer
                  %s414 = sadd.s32 1, %s410
                $region117: #{tpu_custom_call.1} parent=103 // loop_footer_branch
                  %409 = sbr.rel target = $region113
                $region118: #{tpu_custom_call.1} parent=103 // loop_exit
                  _
              $region104: #{tpu_custom_call.1} parent=88 // pred_fallthru
                _
            $region89: #{tpu_custom_call.1} parent=84 // pred_fallthru
              _
            // Predicated region
            $region90: #{tpu_custom_call.1} parent=84 // pred_check
              _
            $region91: #{tpu_custom_call.1} parent=84 // pred_check_branch
              %380 = sbr.rel (0) target = $region93
            $region92: #{tpu_custom_call.1} parent=84 // pred_region
              loop: start=0, step=1, limit=1
              $region94: #{tpu_custom_call.1} parent=92 // loop_pre_header
                _
              $region95: #{tpu_custom_call.1} parent=92 // loop_header
                %s383 = sphi 0, %s387
                %p384 = scmp.ge.s32.totalorder %s383, 1
                %s388 = sphi %s374, %s374
                %s389 = sphi %s370, %s370
              $region96: #{tpu_custom_call.1} parent=92 // loop_header_branch
                %386 = sbr.rel (%p384) target = $region100
              $region97: #{tpu_custom_call.1} parent=92 // loop_body
                %v390 = vld [vmem:[%s388] sm:$0xf]
                %391 = vst [vmem:[%s389] sm:$0xf] %v390
                %v392 = vld [vmem:[%s388 + $0x8] sm:$0xf]
                %393 = vst [vmem:[%s389 + $0x4] sm:$0xf] %v392
                %v394 = vld [vmem:[%s388 + $0x10] sm:$0xf]
                %395 = vst [vmem:[%s389 + $0x8] sm:$0xf] %v394
                %v396 = vld [vmem:[%s388 + $0x18] sm:$0xf]
                %397 = vst [vmem:[%s389 + $0xc] sm:$0xf] %v396
              $region98: #{tpu_custom_call.1} parent=92 // loop_footer
                %s387 = sadd.s32 1, %s383
              $region99: #{tpu_custom_call.1} parent=92 // loop_footer_branch
                %382 = sbr.rel target = $region95
              $region100: #{tpu_custom_call.1} parent=92 // loop_exit
                _
            $region93: #{tpu_custom_call.1} parent=84 // pred_fallthru
              _
          $region85: #{tpu_custom_call.1} parent=80 // pred_fallthru
            _
          %425 = vnop
        $region81: #{tpu_custom_call.1} parent=31 // pred_fallthru
          _
        // Predicated region
        $region119: #{tpu_custom_call.1} parent=31 // pred_check
          %p426 = pneg %p142
        $region120: #{tpu_custom_call.1} parent=31 // pred_check_branch
          %428 = sbr.rel (%p426) target = $region122
        $region121: #{tpu_custom_call.1} parent=31 // pred_region
          %s429 = sand.u32 %s132, 1
          %s430 = sand.u32 %s132, 1
          %s431 = smul.addr %s430, 16
          %s432 = scalar_lea.vmem [#allocation7], %s431
          %s433 = smul.addr %s24, 8
          %s434 = sadd.s32 %s26, %s433
          %s435 = smul.addr %s434, 4
          %s436 = scalar_lea.vmem %s3, %s435
          // Predicated region
          $region123: #{tpu_custom_call.1} parent=121 // pred_check
            _
          $region124: #{tpu_custom_call.1} parent=121 // pred_check_branch
            %438 = sbr.rel (0) target = $region126
          $region125: #{tpu_custom_call.1} parent=121 // pred_region
            // Predicated region
            $region127: #{tpu_custom_call.1} parent=125 // pred_check
              _
            $region128: #{tpu_custom_call.1} parent=125 // pred_check_branch
              %440 = sbr.rel target = $region130
            $region129: #{tpu_custom_call.1} parent=125 // pred_region
              // Predicated region
              $region142: #{tpu_custom_call.1} parent=129 // pred_check
                _
              $region143: #{tpu_custom_call.1} parent=129 // pred_check_branch
                %461 = sbr.rel (0) target = $region145
              $region144: #{tpu_custom_call.1} parent=129 // pred_region
                loop: start=0, step=1, limit=1
                $region146: #{tpu_custom_call.1} parent=144 // loop_pre_header
                  _
                $region147: #{tpu_custom_call.1} parent=144 // loop_header
                  %s463 = sphi 0, %s467
                  %p464 = scmp.ge.s32.totalorder %s463, 1
                  %s468 = sphi %s436, %s436
                  %s469 = sphi %s432, %s432
                $region148: #{tpu_custom_call.1} parent=144 // loop_header_branch
                  %466 = sbr.rel (%p464) target = $region152
                $region149: #{tpu_custom_call.1} parent=144 // loop_body
                  _
                $region150: #{tpu_custom_call.1} parent=144 // loop_footer
                  %s467 = sadd.s32 1, %s463
                $region151: #{tpu_custom_call.1} parent=144 // loop_footer_branch
                  %462 = sbr.rel target = $region147
                $region152: #{tpu_custom_call.1} parent=144 // loop_exit
                  _
                loop: start=0, step=1, limit=1
                $region153: #{tpu_custom_call.1} parent=144 // loop_pre_header
                  _
                $region154: #{tpu_custom_call.1} parent=144 // loop_header
                  %s472 = sphi 0, %s476
                  %p473 = scmp.ge.s32.totalorder %s472, 1
                  %s477 = sphi %s436, %s436
                  %s478 = sphi %s432, %s432
                $region155: #{tpu_custom_call.1} parent=144 // loop_header_branch
                  %475 = sbr.rel (%p473) target = $region159
                $region156: #{tpu_custom_call.1} parent=144 // loop_body
                  %v479 = vld [vmem:[%s477] sm:$0xf]
                  %480 = vst [vmem:[%s478] sm:$0xf] %v479
                  %v481 = vld [vmem:[%s477 + $0x8] sm:$0xf]
                  %482 = vst [vmem:[%s478 + $0x4] sm:$0xf] %v481
                  %v483 = vld [vmem:[%s477 + $0x10] sm:$0xf]
                  %484 = vst [vmem:[%s478 + $0x8] sm:$0xf] %v483
                  %v485 = vld [vmem:[%s477 + $0x18] sm:$0xf]
                  %486 = vst [vmem:[%s478 + $0xc] sm:$0xf] %v485
                $region157: #{tpu_custom_call.1} parent=144 // loop_footer
                  %s476 = sadd.s32 1, %s472
                $region158: #{tpu_custom_call.1} parent=144 // loop_footer_branch
                  %471 = sbr.rel target = $region154
                $region159: #{tpu_custom_call.1} parent=144 // loop_exit
                  _
              $region145: #{tpu_custom_call.1} parent=129 // pred_fallthru
                _
            $region130: #{tpu_custom_call.1} parent=125 // pred_fallthru
              _
            // Predicated region
            $region131: #{tpu_custom_call.1} parent=125 // pred_check
              _
            $region132: #{tpu_custom_call.1} parent=125 // pred_check_branch
              %442 = sbr.rel (0) target = $region134
            $region133: #{tpu_custom_call.1} parent=125 // pred_region
              loop: start=0, step=1, limit=1
              $region135: #{tpu_custom_call.1} parent=133 // loop_pre_header
                _
              $region136: #{tpu_custom_call.1} parent=133 // loop_header
                %s445 = sphi 0, %s449
                %p446 = scmp.ge.s32.totalorder %s445, 1
                %s450 = sphi %s436, %s436
                %s451 = sphi %s432, %s432
              $region137: #{tpu_custom_call.1} parent=133 // loop_header_branch
                %448 = sbr.rel (%p446) target = $region141
              $region138: #{tpu_custom_call.1} parent=133 // loop_body
                %v452 = vld [vmem:[%s450] sm:$0xf]
                %453 = vst [vmem:[%s451] sm:$0xf] %v452
                %v454 = vld [vmem:[%s450 + $0x8] sm:$0xf]
                %455 = vst [vmem:[%s451 + $0x4] sm:$0xf] %v454
                %v456 = vld [vmem:[%s450 + $0x10] sm:$0xf]
                %457 = vst [vmem:[%s451 + $0x8] sm:$0xf] %v456
                %v458 = vld [vmem:[%s450 + $0x18] sm:$0xf]
                %459 = vst [vmem:[%s451 + $0xc] sm:$0xf] %v458
              $region139: #{tpu_custom_call.1} parent=133 // loop_footer
                %s449 = sadd.s32 1, %s445
              $region140: #{tpu_custom_call.1} parent=133 // loop_footer_branch
                %444 = sbr.rel target = $region136
              $region141: #{tpu_custom_call.1} parent=133 // loop_exit
                _
            $region134: #{tpu_custom_call.1} parent=125 // pred_fallthru
              _
          $region126: #{tpu_custom_call.1} parent=121 // pred_fallthru
            _
          %487 = vnop
        $region122: #{tpu_custom_call.1} parent=31 // pred_fallthru
          _
      $region32: #{tpu_custom_call.1} parent=5 // pred_fallthru
        _
      %p488 = scmp.le.s32.totalorder 1, %s17
      %p489 = scmp.lt.s32.totalorder %s17, 9
      %p490 = pnand %p488, %p489
      %p491 = pneg %p490
      // Predicated region
      $region160: #{tpu_custom_call.1} parent=5 // pred_check
        _
      $region161: #{tpu_custom_call.1} parent=5 // pred_check_branch
        %493 = sbr.rel (%p490) target = $region163
      $region162: #{tpu_custom_call.1} parent=5 // pred_region
        %s494 = ssub.s32 %s17, 1
        %s495 = sand.u32 %s79, 1
        %s496 = sand.u32 %s79, 1
        %s497 = smul.addr %s496, 16
        %s498 = scalar_lea.vmem [#allocation5], %s497
        // Predicated region
        $region164: #{tpu_custom_call.1} parent=162 // pred_check
          %p499 = pneg %p92
        $region165: #{tpu_custom_call.1} parent=162 // pred_check_branch
          %501 = sbr.rel (%p499) target = $region167
        $region166: #{tpu_custom_call.1} parent=162 // pred_region
          _
        $region167: #{tpu_custom_call.1} parent=162 // pred_fallthru
          _
        %s502 = sand.u32 %s107, 1
        %s503 = sand.u32 %s107, 1
        %s504 = smul.addr %s503, 16
        %s505 = scalar_lea.vmem [#allocation6], %s504
        // Predicated region
        $region168: #{tpu_custom_call.1} parent=162 // pred_check
          %p506 = pneg %p120
        $region169: #{tpu_custom_call.1} parent=162 // pred_check_branch
          %508 = sbr.rel (%p506) target = $region171
        $region170: #{tpu_custom_call.1} parent=162 // pred_region
          _
        $region171: #{tpu_custom_call.1} parent=162 // pred_fallthru
          _
        %s509 = sand.u32 %s135, 1
        %s510 = sand.u32 %s135, 1
        %s511 = smul.addr %s510, 16
        %s512 = scalar_lea.vmem [#allocation7], %s511
        // Predicated region
        $region172: #{tpu_custom_call.1} parent=162 // pred_check
          %p513 = pneg %p148
        $region173: #{tpu_custom_call.1} parent=162 // pred_check_branch
          %515 = sbr.rel (%p513) target = $region175
        $region174: #{tpu_custom_call.1} parent=162 // pred_region
          _
        $region175: #{tpu_custom_call.1} parent=162 // pred_fallthru
          _
        %p516 = scmp.lt.s32.totalorder %s27, 1
        %s517 = scalar_select %p516, %s27, 1
        %p518 = scmp.lt.s32.totalorder %s28, 1
        %s519 = scalar_select %p518, %s28, 1
        %s520 = smul.addr %s517, 2
        %s521 = sadd.s32 %s519, %s520
        %s522 = smul.addr %s521, 8
        %s523 = scalar_lea.vmem %s0, %s522
        %p524 = pneg %p64
        %p525 = pneg %p61
        %s526 = sand.u32 %s79, 1
        %s527 = sand.u32 %s79, 1
        %s528 = smul.addr %s527, 16
        %s529 = scalar_lea.vmem [#allocation5], %s528
        %p530 = pneg %p92
        %p531 = pneg %p89
        %s532 = sand.u32 %s107, 1
        %s533 = sand.u32 %s107, 1
        %s534 = smul.addr %s533, 16
        %s535 = scalar_lea.vmem [#allocation6], %s534
        %p536 = pneg %p120
        %p537 = pneg %p117
        %s538 = sand.u32 %s135, 1
        %s539 = sand.u32 %s135, 1
        %s540 = smul.addr %s539, 16
        %s541 = scalar_lea.vmem [#allocation7], %s540
        %p542 = pneg %p148
        %p543 = pneg %p145
        %p544 = pneg %p169
        %p545 = pneg %p166
        %p546 = pneg %p190
        %p547 = pneg %p187
        %p548 = pneg %p211
        %p549 = pneg %p208
        %p550 = pneg %p232
        %p551 = pneg %p229
        %p552 = pneg %p260
        %p553 = pneg %p257
        %s554 = sand.u32 %s247, 1
        %s555 = scalar_lea.sflag [#allocation9], %s554
        %s556 = sand.u32 %s247, 1
        %s557 = smul.addr %s556, 8
        %s558 = scalar_lea.vmem [#allocation8], %s557
        %p559 = scmp.lt.s32.totalorder %s27, 1
        %s560 = scalar_select %p559, %s27, 1
        %p561 = scmp.lt.s32.totalorder %s28, 1
        %s562 = scalar_select %p561, %s28, 1
        %s563 = smul.addr %s560, 2
        %s564 = sadd.s32 %s562, %s563
        %s565 = smul.addr %s564, 8
        %s566 = scalar_lea.vmem %s0, %s565
        %p568 = scmp.eq.s32.totalorder %s29, 0
        // Predicated region
        $region176: #{tpu_custom_call.1} parent=162 // pred_check
          %p569 = pneg %p568
        $region177: #{tpu_custom_call.1} parent=162 // pred_check_branch
          %571 = sbr.rel (%p569) target = $region179
        $region178: #{tpu_custom_call.1} parent=162 // pred_region
          %vm572 = vcmask 7168
          %573 = vst.msk [vmem:[#allocation2] sm:$0xff] %vm572, -inf
          %574 = vst.msk [vmem:[#allocation2 + $0x8] sm:$0xff] %vm572, -inf
          %575 = vst.msk [vmem:[#allocation2 + $0x10] sm:$0xff] %vm572, -inf
          %576 = vst.msk [vmem:[#allocation2 + $0x18] sm:$0xff] %vm572, -inf
          %577 = vst.msk [vmem:[#allocation3] sm:$0xff] %vm572, 0.0
          %578 = vst.msk [vmem:[#allocation3 + $0x8] sm:$0xff] %vm572, 0.0
          %579 = vst.msk [vmem:[#allocation3 + $0x10] sm:$0xff] %vm572, 0.0
          %580 = vst.msk [vmem:[#allocation3 + $0x18] sm:$0xff] %vm572, 0.0
          %vm581 = vcmask 97280
          %582 = vst.msk [vmem:[#allocation4] sm:$0xff] %vm581, 0.0
          %583 = vst.msk [vmem:[#allocation4 + $0x8] sm:$0xff] %vm581, 0.0
          %584 = vst.msk [vmem:[#allocation4 + $0x10] sm:$0xff] %vm581, 0.0
          %585 = vst.msk [vmem:[#allocation4 + $0x18] sm:$0xff] %vm581, 0.0
        $region179: #{tpu_custom_call.1} parent=162 // pred_fallthru
          _
        %v586 = vld [vmem:[%s498] sm:$0xf]
        %v587 = vld [vmem:[%s498 + $0x4] sm:$0xf]
        %v588 = vld [vmem:[%s498 + $0x8] sm:$0xf]
        %v589 = vld [vmem:[%s498 + $0xc] sm:$0xf]
        %v590 = vld [vmem:[%s505] sm:$0xf]
        %v591 = vld [vmem:[%s505 + $0x4] sm:$0xf]
        %v592 = vld [vmem:[%s505 + $0x8] sm:$0xf]
        %v593 = vld [vmem:[%s505 + $0xc] sm:$0xf]
        %v594 = vld [vmem:[%s512] sm:$0xf]
        %v595 = vld [vmem:[%s512 + $0x4] sm:$0xf]
        %v596 = vld [vmem:[%s512 + $0x8] sm:$0xf]
        %v597 = vld [vmem:[%s512 + $0xc] sm:$0xf]
        %vm598 = vcmask 97280
        %v600 = vsel %vm598, %v586, 0
        %v603 = vsel %vm598, %v590, 0
        %605 = vmatprep.subr.bf16.mxu0 0
        %606 = vmatpush1.bf16.xpose.msra.mxu0 %v603
        %607 = vmatprep.subr.bf16.mxu0 0
        %608 = vmatpush1.bf16.xpose.msra.mxu0 0
        %609 = vmatprep.subr.bf16.mxu0 0
        %610 = vmatpush1.bf16.xpose.msra.mxu0 0
        %611 = vmatprep.subr.bf16.mxu0 0
        %612 = vmatpush1.bf16.xpose.msra.mxu0 0
        %613 = vmatprep.subr.bf16.mxu0 0
        %614 = vmatpush1.bf16.xpose.msra.mxu0 0
        %615 = vmatprep.subr.bf16.mxu0 0
        %616 = vmatpush1.bf16.xpose.msra.mxu0 0
        %617 = vmatprep.subr.bf16.mxu0 0
        %618 = vmatpush1.bf16.xpose.msra.mxu0 0
        %619 = vmatprep.subr.bf16.mxu0 0
        %620 = vmatpush1.bf16.xpose.msra.mxu0 0
        %621 = vmatprep.subr.bf16.mxu0 0
        %622 = vmatpush1.bf16.xpose.msra.mxu0 0
        %623 = vmatprep.subr.bf16.mxu0 0
        %624 = vmatpush1.bf16.xpose.msra.mxu0 0
        %625 = vmatprep.subr.bf16.mxu0 0
        %626 = vmatpush1.bf16.xpose.msra.mxu0 0
        %627 = vmatprep.subr.bf16.mxu0 0
        %628 = vmatpush1.bf16.xpose.msra.mxu0 0
        %629 = vmatprep.subr.bf16.mxu0 0
        %630 = vmatpush1.bf16.xpose.msra.mxu0 0
        %631 = vmatprep.subr.bf16.mxu0 0
        %632 = vmatpush1.bf16.xpose.msra.mxu0 0
        %633 = vmatprep.subr.bf16.mxu0 0
        %634 = vmatpush1.bf16.xpose.msra.mxu0 0
        %635 = vmatprep.subr.bf16.mxu0 0
        %636 = vmatpush1.bf16.xpose.msra.mxu0 0
        %637 = vmatprep.mubr.bf16.mxu0 0
        %638 = vmatmul.mubr.bf16.gmra.mrb[0].mxu0 %v600
        %v639 = vpop.f32.mrb[0].mxu0
        %v640 = vadd.f32 0.0, %v639
        %v641 = vpop.f32.mrb[0].mxu0
        %v642 = vpop.f32.mrb[0].mxu0
        %v643 = vpop.f32.mrb[0].mxu0
        %644 = vdwg.mxu0
        %v646 = vsel %vm598, %v587, 0
        %v649 = vsel %vm598, %v591, 0
        %651 = vmatprep.subr.bf16.mxu0 0
        %652 = vmatpush1.bf16.xpose.msra.mxu0 %v649
        %653 = vmatprep.subr.bf16.mxu0 0
        %654 = vmatpush1.bf16.xpose.msra.mxu0 0
        %655 = vmatprep.subr.bf16.mxu0 0
        %656 = vmatpush1.bf16.xpose.msra.mxu0 0
        %657 = vmatprep.subr.bf16.mxu0 0
        %658 = vmatpush1.bf16.xpose.msra.mxu0 0
        %659 = vmatprep.subr.bf16.mxu0 0
        %660 = vmatpush1.bf16.xpose.msra.mxu0 0
        %661 = vmatprep.subr.bf16.mxu0 0
        %662 = vmatpush1.bf16.xpose.msra.mxu0 0
        %663 = vmatprep.subr.bf16.mxu0 0
        %664 = vmatpush1.bf16.xpose.msra.mxu0 0
        %665 = vmatprep.subr.bf16.mxu0 0
        %666 = vmatpush1.bf16.xpose.msra.mxu0 0
        %667 = vmatprep.subr.bf16.mxu0 0
        %668 = vmatpush1.bf16.xpose.msra.mxu0 0
        %669 = vmatprep.subr.bf16.mxu0 0
        %670 = vmatpush1.bf16.xpose.msra.mxu0 0
        %671 = vmatprep.subr.bf16.mxu0 0
        %672 = vmatpush1.bf16.xpose.msra.mxu0 0
        %673 = vmatprep.subr.bf16.mxu0 0
        %674 = vmatpush1.bf16.xpose.msra.mxu0 0
        %675 = vmatprep.subr.bf16.mxu0 0
        %676 = vmatpush1.bf16.xpose.msra.mxu0 0
        %677 = vmatprep.subr.bf16.mxu0 0
        %678 = vmatpush1.bf16.xpose.msra.mxu0 0
        %679 = vmatprep.subr.bf16.mxu0 0
        %680 = vmatpush1.bf16.xpose.msra.mxu0 0
        %681 = vmatprep.subr.bf16.mxu0 0
        %682 = vmatpush1.bf16.xpose.msra.mxu0 0
        %683 = vmatprep.mubr.bf16.mxu0 0
        %684 = vmatmul.mubr.bf16.gmra.mrb[0].mxu0 %v646
        %v685 = vpop.f32.mrb[0].mxu0
        %v686 = vadd.f32 0.0, %v685
        %v687 = vpop.f32.mrb[0].mxu0
        %v688 = vpop.f32.mrb[0].mxu0
        %v689 = vpop.f32.mrb[0].mxu0
        %690 = vdwg.mxu0
        %v692 = vsel %vm598, %v588, 0
        %v695 = vsel %vm598, %v592, 0
        %697 = vmatprep.subr.bf16.mxu0 0
        %698 = vmatpush1.bf16.xpose.msra.mxu0 %v695
        %699 = vmatprep.subr.bf16.mxu0 0
        %700 = vmatpush1.bf16.xpose.msra.mxu0 0
        %701 = vmatprep.subr.bf16.mxu0 0
        %702 = vmatpush1.bf16.xpose.msra.mxu0 0
        %703 = vmatprep.subr.bf16.mxu0 0
        %704 = vmatpush1.bf16.xpose.msra.mxu0 0
        %705 = vmatprep.subr.bf16.mxu0 0
        %706 = vmatpush1.bf16.xpose.msra.mxu0 0
        %707 = vmatprep.subr.bf16.mxu0 0
        %708 = vmatpush1.bf16.xpose.msra.mxu0 0
        %709 = vmatprep.subr.bf16.mxu0 0
        %710 = vmatpush1.bf16.xpose.msra.mxu0 0
        %711 = vmatprep.subr.bf16.mxu0 0
        %712 = vmatpush1.bf16.xpose.msra.mxu0 0
        %713 = vmatprep.subr.bf16.mxu0 0
        %714 = vmatpush1.bf16.xpose.msra.mxu0 0
        %715 = vmatprep.subr.bf16.mxu0 0
        %716 = vmatpush1.bf16.xpose.msra.mxu0 0
        %717 = vmatprep.subr.bf16.mxu0 0
        %718 = vmatpush1.bf16.xpose.msra.mxu0 0
        %719 = vmatprep.subr.bf16.mxu0 0
        %720 = vmatpush1.bf16.xpose.msra.mxu0 0
        %721 = vmatprep.subr.bf16.mxu0 0
        %722 = vmatpush1.bf16.xpose.msra.mxu0 0
        %723 = vmatprep.subr.bf16.mxu0 0
        %724 = vmatpush1.bf16.xpose.msra.mxu0 0
        %725 = vmatprep.subr.bf16.mxu0 0
        %726 = vmatpush1.bf16.xpose.msra.mxu0 0
        %727 = vmatprep.subr.bf16.mxu0 0
        %728 = vmatpush1.bf16.xpose.msra.mxu0 0
        %729 = vmatprep.mubr.bf16.mxu0 0
        %730 = vmatmul.mubr.bf16.gmra.mrb[0].mxu0 %v692
        %v731 = vpop.f32.mrb[0].mxu0
        %v732 = vadd.f32 0.0, %v731
        %v733 = vpop.f32.mrb[0].mxu0
        %v734 = vpop.f32.mrb[0].mxu0
        %v735 = vpop.f32.mrb[0].mxu0
        %736 = vdwg.mxu0
        %v738 = vsel %vm598, %v589, 0
        %v741 = vsel %vm598, %v593, 0
        %743 = vmatprep.subr.bf16.mxu0 0
        %744 = vmatpush1.bf16.xpose.msra.mxu0 %v741
        %745 = vmatprep.subr.bf16.mxu0 0
        %746 = vmatpush1.bf16.xpose.msra.mxu0 0
        %747 = vmatprep.subr.bf16.mxu0 0
        %748 = vmatpush1.bf16.xpose.msra.mxu0 0
        %749 = vmatprep.subr.bf16.mxu0 0
        %750 = vmatpush1.bf16.xpose.msra.mxu0 0
        %751 = vmatprep.subr.bf16.mxu0 0
        %752 = vmatpush1.bf16.xpose.msra.mxu0 0
        %753 = vmatprep.subr.bf16.mxu0 0
        %754 = vmatpush1.bf16.xpose.msra.mxu0 0
        %755 = vmatprep.subr.bf16.mxu0 0
        %756 = vmatpush1.bf16.xpose.msra.mxu0 0
        %757 = vmatprep.subr.bf16.mxu0 0
        %758 = vmatpush1.bf16.xpose.msra.mxu0 0
        %759 = vmatprep.subr.bf16.mxu0 0
        %760 = vmatpush1.bf16.xpose.msra.mxu0 0
        %761 = vmatprep.subr.bf16.mxu0 0
        %762 = vmatpush1.bf16.xpose.msra.mxu0 0
        %763 = vmatprep.subr.bf16.mxu0 0
        %764 = vmatpush1.bf16.xpose.msra.mxu0 0
        %765 = vmatprep.subr.bf16.mxu0 0
        %766 = vmatpush1.bf16.xpose.msra.mxu0 0
        %767 = vmatprep.subr.bf16.mxu0 0
        %768 = vmatpush1.bf16.xpose.msra.mxu0 0
        %769 = vmatprep.subr.bf16.mxu0 0
        %770 = vmatpush1.bf16.xpose.msra.mxu0 0
        %771 = vmatprep.subr.bf16.mxu0 0
        %772 = vmatpush1.bf16.xpose.msra.mxu0 0
        %773 = vmatprep.subr.bf16.mxu0 0
        %774 = vmatpush1.bf16.xpose.msra.mxu0 0
        %775 = vmatprep.mubr.bf16.mxu0 0
        %776 = vmatmul.mubr.bf16.gmra.mrb[0].mxu0 %v738
        %v777 = vpop.f32.mrb[0].mxu0
        %v778 = vadd.f32 0.0, %v777
        %v779 = vpop.f32.mrb[0].mxu0
        %v780 = vpop.f32.mrb[0].mxu0
        %v781 = vpop.f32.mrb[0].mxu0
        %782 = vdwg.mxu0
        %v783 = vld [vmem:[#allocation2] sm:$0xff]
        %v784 = vld [vmem:[#allocation2 + $0x8] sm:$0xff]
        %v785 = vld [vmem:[#allocation2 + $0x10] sm:$0xff]
        %v786 = vld [vmem:[#allocation2 + $0x18] sm:$0xff]
        %vm787 = vcmask 64512
        %v788 = vsel %vm787, %v640, -inf
        %789 = vmax.xlane.f32.xlu0 %v788
        %v790 = vpop.xlane.xlu0 %789
        %v791 = vsel %vm787, %v686, -inf
        %792 = vmax.xlane.f32.xlu0 %v791
        %v793 = vpop.xlane.xlu0 %792
        %v794 = vsel %vm787, %v732, -inf
        %795 = vmax.xlane.f32.xlu0 %v794
        %v796 = vpop.xlane.xlu0 %795
        %v797 = vsel %vm787, %v778, -inf
        %798 = vmax.xlane.f32.xlu0 %v797
        %v799 = vpop.xlane.xlu0 %798
        %v800 = vmax.f32 %v783, %v790
        %v801 = vmax.f32 %v784, %v793
        %v802 = vmax.f32 %v785, %v796
        %v803 = vmax.f32 %v786, %v799
        %v804 = vsub.f32 %v783, %v800
        %v805 = vsub.f32 %v784, %v801
        %v806 = vsub.f32 %v785, %v802
        %v807 = vsub.f32 %v786, %v803
        %v808 = vmul.f32 %v804, 1.442695
        %v809 = vpow.pop %v808
        %v810 = vmul.f32 %v805, 1.442695
        %v811 = vpow.pop %v810
        %v812 = vmul.f32 %v806, 1.442695
        %v813 = vpow.pop %v812
        %v814 = vmul.f32 %v807, 1.442695
        %v815 = vpow.pop %v814
        %817 = vset.pattern.permute.xlu0 0
        %818 = vperm.xlu0 %817, %v800
        %v819 = vpop.permute.xlu0 %818
        %822 = vset.pattern.permute.xlu0 0
        %823 = vperm.xlu0 %822, %v801
        %v824 = vpop.permute.xlu0 %823
        %827 = vset.pattern.permute.xlu0 0
        %828 = vperm.xlu0 %827, %v802
        %v829 = vpop.permute.xlu0 %828
        %832 = vset.pattern.permute.xlu0 0
        %833 = vperm.xlu0 %832, %v803
        %v834 = vpop.permute.xlu0 %833
        %v836 = vsub.f32 %v640, %v819
        %v837 = vsub.f32 %v686, %v824
        %v838 = vsub.f32 %v732, %v829
        %v839 = vsub.f32 %v778, %v834
        %v840 = vmul.f32 %v836, 1.442695
        %v841 = vpow.pop %v840
        %v842 = vmul.f32 %v837, 1.442695
        %v843 = vpow.pop %v842
        %v844 = vmul.f32 %v838, 1.442695
        %v845 = vpow.pop %v844
        %v846 = vmul.f32 %v839, 1.442695
        %v847 = vpow.pop %v846
        %v848 = vld [vmem:[#allocation3] sm:$0xff]
        %v849 = vld [vmem:[#allocation3 + $0x8] sm:$0xff]
        %v850 = vld [vmem:[#allocation3 + $0x10] sm:$0xff]
        %v851 = vld [vmem:[#allocation3 + $0x18] sm:$0xff]
        %v852 = vmul.f32 %v809, %v848
        %v853 = vmul.f32 %v811, %v849
        %v854 = vmul.f32 %v813, %v850
        %v855 = vmul.f32 %v815, %v851
        %v856 = vsel %vm787, %v841, 0.0
        %857 = vadd.xlane.f32.xlu0 %v856
        %v858 = vpop.xlane.xlu0 %857
        %v859 = vsel %vm787, %v843, 0.0
        %860 = vadd.xlane.f32.xlu0 %v859
        %v861 = vpop.xlane.xlu0 %860
        %v862 = vsel %vm787, %v845, 0.0
        %863 = vadd.xlane.f32.xlu0 %v862
        %v864 = vpop.xlane.xlu0 %863
        %v865 = vsel %vm787, %v847, 0.0
        %866 = vadd.xlane.f32.xlu0 %v865
        %v867 = vpop.xlane.xlu0 %866
        %v868 = vadd.f32 %v852, %v858
        %v869 = vadd.f32 %v853, %v861
        %v870 = vadd.f32 %v854, %v864
        %v871 = vadd.f32 %v855, %v867
        %vm872 = vcmask 7168
        %873 = vst.msk [vmem:[#allocation3] sm:$0xff] %vm872, %v868
        %874 = vst.msk [vmem:[#allocation3 + $0x8] sm:$0xff] %vm872, %v869
        %875 = vst.msk [vmem:[#allocation3 + $0x10] sm:$0xff] %vm872, %v870
        %876 = vst.msk [vmem:[#allocation3 + $0x18] sm:$0xff] %vm872, %v871
        %v877 = vpack.c.bf16 %v841, %v841
        %v878 = vpack.c.bf16 %v843, %v843
        %v879 = vpack.c.bf16 %v845, %v845
        %v880 = vpack.c.bf16 %v847, %v847
        %v882 = vsel %vm787, %v877, 0
        %vm884 = vcmask 1043456
        %v886 = vsel %vm884, %v594, 0
        %888 = vmatprep.subr.bf16.mxu0 0
        %889 = vmatpush1.bf16.msra.mxu0 %v886
        %890 = vmatprep.subr.bf16.mxu0 0
        %891 = vmatpush1.bf16.msra.mxu0 0
        %892 = vmatprep.subr.bf16.mxu0 0
        %893 = vmatpush1.bf16.msra.mxu0 0
        %894 = vmatprep.subr.bf16.mxu0 0
        %895 = vmatpush1.bf16.msra.mxu0 0
        %896 = vmatprep.subr.bf16.mxu0 0
        %897 = vmatpush1.bf16.msra.mxu0 0
        %898 = vmatprep.subr.bf16.mxu0 0
        %899 = vmatpush1.bf16.msra.mxu0 0
        %900 = vmatprep.subr.bf16.mxu0 0
        %901 = vmatpush1.bf16.msra.mxu0 0
        %902 = vmatprep.subr.bf16.mxu0 0
        %903 = vmatpush1.bf16.msra.mxu0 0
        %904 = vmatprep.subr.bf16.mxu0 0
        %905 = vmatpush1.bf16.msra.mxu0 0
        %906 = vmatprep.subr.bf16.mxu0 0
        %907 = vmatpush1.bf16.msra.mxu0 0
        %908 = vmatprep.subr.bf16.mxu0 0
        %909 = vmatpush1.bf16.msra.mxu0 0
        %910 = vmatprep.subr.bf16.mxu0 0
        %911 = vmatpush1.bf16.msra.mxu0 0
        %912 = vmatprep.subr.bf16.mxu0 0
        %913 = vmatpush1.bf16.msra.mxu0 0
        %914 = vmatprep.subr.bf16.mxu0 0
        %915 = vmatpush1.bf16.msra.mxu0 0
        %916 = vmatprep.subr.bf16.mxu0 0
        %917 = vmatpush1.bf16.msra.mxu0 0
        %918 = vmatprep.subr.bf16.mxu0 0
        %919 = vmatpush1.bf16.msra.mxu0 0
        %920 = vmatprep.mubr.bf16.mxu0 0
        %921 = vmatmul.mubr.bf16.gmra.mrb[0].mxu0 %v882
        %v922 = vpop.f32.mrb[0].mxu0
        %v923 = vadd.f32 0.0, %v922
        %v924 = vpop.f32.mrb[0].mxu0
        %v925 = vpop.f32.mrb[0].mxu0
        %v926 = vpop.f32.mrb[0].mxu0
        %927 = vdwg.mxu0
        %v929 = vsel %vm787, %v878, 0
        %v932 = vsel %vm884, %v595, 0
        %934 = vmatprep.subr.bf16.mxu0 0
        %935 = vmatpush1.bf16.msra.mxu0 %v932
        %936 = vmatprep.subr.bf16.mxu0 0
        %937 = vmatpush1.bf16.msra.mxu0 0
        %938 = vmatprep.subr.bf16.mxu0 0
        %939 = vmatpush1.bf16.msra.mxu0 0
        %940 = vmatprep.subr.bf16.mxu0 0
        %941 = vmatpush1.bf16.msra.mxu0 0
        %942 = vmatprep.subr.bf16.mxu0 0
        %943 = vmatpush1.bf16.msra.mxu0 0
        %944 = vmatprep.subr.bf16.mxu0 0
        %945 = vmatpush1.bf16.msra.mxu0 0
        %946 = vmatprep.subr.bf16.mxu0 0
        %947 = vmatpush1.bf16.msra.mxu0 0
        %948 = vmatprep.subr.bf16.mxu0 0
        %949 = vmatpush1.bf16.msra.mxu0 0
        %950 = vmatprep.subr.bf16.mxu0 0
        %951 = vmatpush1.bf16.msra.mxu0 0
        %952 = vmatprep.subr.bf16.mxu0 0
        %953 = vmatpush1.bf16.msra.mxu0 0
        %954 = vmatprep.subr.bf16.mxu0 0
        %955 = vmatpush1.bf16.msra.mxu0 0
        %956 = vmatprep.subr.bf16.mxu0 0
        %957 = vmatpush1.bf16.msra.mxu0 0
        %958 = vmatprep.subr.bf16.mxu0 0
        %959 = vmatpush1.bf16.msra.mxu0 0
        %960 = vmatprep.subr.bf16.mxu0 0
        %961 = vmatpush1.bf16.msra.mxu0 0
        %962 = vmatprep.subr.bf16.mxu0 0
        %963 = vmatpush1.bf16.msra.mxu0 0
        %964 = vmatprep.subr.bf16.mxu0 0
        %965 = vmatpush1.bf16.msra.mxu0 0
        %966 = vmatprep.mubr.bf16.mxu0 0
        %967 = vmatmul.mubr.bf16.gmra.mrb[0].mxu0 %v929
        %v968 = vpop.f32.mrb[0].mxu0
        %v969 = vadd.f32 0.0, %v968
        %v970 = vpop.f32.mrb[0].mxu0
        %v971 = vpop.f32.mrb[0].mxu0
        %v972 = vpop.f32.mrb[0].mxu0
        %973 = vdwg.mxu0
        %v975 = vsel %vm787, %v879, 0
        %v978 = vsel %vm884, %v596, 0
        %980 = vmatprep.subr.bf16.mxu0 0
        %981 = vmatpush1.bf16.msra.mxu0 %v978
        %982 = vmatprep.subr.bf16.mxu0 0
        %983 = vmatpush1.bf16.msra.mxu0 0
        %984 = vmatprep.subr.bf16.mxu0 0
        %985 = vmatpush1.bf16.msra.mxu0 0
        %986 = vmatprep.subr.bf16.mxu0 0
        %987 = vmatpush1.bf16.msra.mxu0 0
        %988 = vmatprep.subr.bf16.mxu0 0
        %989 = vmatpush1.bf16.msra.mxu0 0
        %990 = vmatprep.subr.bf16.mxu0 0
        %991 = vmatpush1.bf16.msra.mxu0 0
        %992 = vmatprep.subr.bf16.mxu0 0
        %993 = vmatpush1.bf16.msra.mxu0 0
        %994 = vmatprep.subr.bf16.mxu0 0
        %995 = vmatpush1.bf16.msra.mxu0 0
        %996 = vmatprep.subr.bf16.mxu0 0
        %997 = vmatpush1.bf16.msra.mxu0 0
        %998 = vmatprep.subr.bf16.mxu0 0
        %999 = vmatpush1.bf16.msra.mxu0 0
        %1000 = vmatprep.subr.bf16.mxu0 0
        %1001 = vmatpush1.bf16.msra.mxu0 0
        %1002 = vmatprep.subr.bf16.mxu0 0
        %1003 = vmatpush1.bf16.msra.mxu0 0
        %1004 = vmatprep.subr.bf16.mxu0 0
        %1005 = vmatpush1.bf16.msra.mxu0 0
        %1006 = vmatprep.subr.bf16.mxu0 0
        %1007 = vmatpush1.bf16.msra.mxu0 0
        %1008 = vmatprep.subr.bf16.mxu0 0
        %1009 = vmatpush1.bf16.msra.mxu0 0
        %1010 = vmatprep.subr.bf16.mxu0 0
        %1011 = vmatpush1.bf16.msra.mxu0 0
        %1012 = vmatprep.mubr.bf16.mxu0 0
        %1013 = vmatmul.mubr.bf16.gmra.mrb[0].mxu0 %v975
        %v1014 = vpop.f32.mrb[0].mxu0
        %v1015 = vadd.f32 0.0, %v1014
        %v1016 = vpop.f32.mrb[0].mxu0
        %v1017 = vpop.f32.mrb[0].mxu0
        %v1018 = vpop.f32.mrb[0].mxu0
        %1019 = vdwg.mxu0
        %v1021 = vsel %vm787, %v880, 0
        %v1024 = vsel %vm884, %v597, 0
        %1026 = vmatprep.subr.bf16.mxu0 0
        %1027 = vmatpush1.bf16.msra.mxu0 %v1024
        %1028 = vmatprep.subr.bf16.mxu0 0
        %1029 = vmatpush1.bf16.msra.mxu0 0
        %1030 = vmatprep.subr.bf16.mxu0 0
        %1031 = vmatpush1.bf16.msra.mxu0 0
        %1032 = vmatprep.subr.bf16.mxu0 0
        %1033 = vmatpush1.bf16.msra.mxu0 0
        %1034 = vmatprep.subr.bf16.mxu0 0
        %1035 = vmatpush1.bf16.msra.mxu0 0
        %1036 = vmatprep.subr.bf16.mxu0 0
        %1037 = vmatpush1.bf16.msra.mxu0 0
        %1038 = vmatprep.subr.bf16.mxu0 0
        %1039 = vmatpush1.bf16.msra.mxu0 0
        %1040 = vmatprep.subr.bf16.mxu0 0
        %1041 = vmatpush1.bf16.msra.mxu0 0
        %1042 = vmatprep.subr.bf16.mxu0 0
        %1043 = vmatpush1.bf16.msra.mxu0 0
        %1044 = vmatprep.subr.bf16.mxu0 0
        %1045 = vmatpush1.bf16.msra.mxu0 0
        %1046 = vmatprep.subr.bf16.mxu0 0
        %1047 = vmatpush1.bf16.msra.mxu0 0
        %1048 = vmatprep.subr.bf16.mxu0 0
        %1049 = vmatpush1.bf16.msra.mxu0 0
        %1050 = vmatprep.subr.bf16.mxu0 0
        %1051 = vmatpush1.bf16.msra.mxu0 0
        %1052 = vmatprep.subr.bf16.mxu0 0
        %1053 = vmatpush1.bf16.msra.mxu0 0
        %1054 = vmatprep.subr.bf16.mxu0 0
        %1055 = vmatpush1.bf16.msra.mxu0 0
        %1056 = vmatprep.subr.bf16.mxu0 0
        %1057 = vmatpush1.bf16.msra.mxu0 0
        %1058 = vmatprep.mubr.bf16.mxu0 0
        %1059 = vmatmul.mubr.bf16.gmra.mrb[0].mxu0 %v1021
        %v1060 = vpop.f32.mrb[0].mxu0
        %v1061 = vadd.f32 0.0, %v1060
        %v1062 = vpop.f32.mrb[0].mxu0
        %v1063 = vpop.f32.mrb[0].mxu0
        %v1064 = vpop.f32.mrb[0].mxu0
        %1065 = vdwg.mxu0
        %v1066 = vld [vmem:[#allocation4] sm:$0xff]
        %v1067 = vld [vmem:[#allocation4 + $0x8] sm:$0xff]
        %v1068 = vld [vmem:[#allocation4 + $0x10] sm:$0xff]
        %v1069 = vld [vmem:[#allocation4 + $0x18] sm:$0xff]
        %1071 = vset.pattern.permute.xlu0 0
        %1072 = vperm.xlu0 %1071, %v809
        %v1073 = vpop.permute.xlu0 %1072
        %1076 = vset.pattern.permute.xlu0 0
        %1077 = vperm.xlu0 %1076, %v811
        %v1078 = vpop.permute.xlu0 %1077
        %1081 = vset.pattern.permute.xlu0 0
        %1082 = vperm.xlu0 %1081, %v813
        %v1083 = vpop.permute.xlu0 %1082
        %1086 = vset.pattern.permute.xlu0 0
        %1087 = vperm.xlu0 %1086, %v815
        %v1088 = vpop.permute.xlu0 %1087
        %v1090 = vmul.f32 %v1073, %v1066
        %v1091 = vmul.f32 %v1078, %v1067
        %v1092 = vmul.f32 %v1083, %v1068
        %v1093 = vmul.f32 %v1088, %v1069
        %v1094 = vadd.f32 %v1090, %v923
        %v1095 = vadd.f32 %v1091, %v969
        %v1096 = vadd.f32 %v1092, %v1015
        %v1097 = vadd.f32 %v1093, %v1061
        %1098 = vst.msk [vmem:[#allocation4] sm:$0xff] %vm598, %v1094
        %1099 = vst.msk [vmem:[#allocation4 + $0x8] sm:$0xff] %vm598, %v1095
        %1100 = vst.msk [vmem:[#allocation4 + $0x10] sm:$0xff] %vm598, %v1096
        %1101 = vst.msk [vmem:[#allocation4 + $0x18] sm:$0xff] %vm598, %v1097
        %1102 = vst.msk [vmem:[#allocation2] sm:$0xff] %vm872, %v800
        %1103 = vst.msk [vmem:[#allocation2 + $0x8] sm:$0xff] %vm872, %v801
        %1104 = vst.msk [vmem:[#allocation2 + $0x10] sm:$0xff] %vm872, %v802
        %1105 = vst.msk [vmem:[#allocation2 + $0x18] sm:$0xff] %vm872, %v803
        %p1106 = scmp.eq.s32.totalorder %s29, 1
        // Predicated region
        $region180: #{tpu_custom_call.1} parent=162 // pred_check
          %p1107 = pneg %p1106
        $region181: #{tpu_custom_call.1} parent=162 // pred_check_branch
          %1109 = sbr.rel (%p1107) target = $region183
        $region182: #{tpu_custom_call.1} parent=162 // pred_region
          %v1110 = vld [vmem:[#allocation4] sm:$0xff]
          %v1111 = vld [vmem:[#allocation4 + $0x8] sm:$0xff]
          %v1112 = vld [vmem:[#allocation4 + $0x10] sm:$0xff]
          %v1113 = vld [vmem:[#allocation4 + $0x18] sm:$0xff]
          %v1114 = vld [vmem:[#allocation3] sm:$0xff]
          %v1115 = vld [vmem:[#allocation3 + $0x8] sm:$0xff]
          %v1116 = vld [vmem:[#allocation3 + $0x10] sm:$0xff]
          %v1117 = vld [vmem:[#allocation3 + $0x18] sm:$0xff]
          %1119 = vset.pattern.permute.xlu0 0
          %1120 = vperm.xlu0 %1119, %v1114
          %v1121 = vpop.permute.xlu0 %1120
          %1124 = vset.pattern.permute.xlu0 0
          %1125 = vperm.xlu0 %1124, %v1115
          %v1126 = vpop.permute.xlu0 %1125
          %1129 = vset.pattern.permute.xlu0 0
          %1130 = vperm.xlu0 %1129, %v1116
          %v1131 = vpop.permute.xlu0 %1130
          %1134 = vset.pattern.permute.xlu0 0
          %1135 = vperm.xlu0 %1134, %v1117
          %v1136 = vpop.permute.xlu0 %1135
          %v1138 = vrcp.pop %v1121
          %v1139 = vmul.f32 %v1110, %v1138
          %v1140 = vrcp.pop %v1126
          %v1141 = vmul.f32 %v1111, %v1140
          %v1142 = vrcp.pop %v1131
          %v1143 = vmul.f32 %v1112, %v1142
          %v1144 = vrcp.pop %v1136
          %v1145 = vmul.f32 %v1113, %v1144
          %1147 = vrot.lane.b32.xlu0 %v1141, 12
          %v1148 = vpop.permute.xlu0 %1147
          %1151 = vrot.lane.b32.xlu0 %v1143, 24
          %v1152 = vpop.permute.xlu0 %1151
          %1155 = vrot.lane.b32.xlu0 %v1145, 36
          %v1156 = vpop.permute.xlu0 %1155
          %v1158 = vsel %vm598, %v1139, %v1148
          %vm1159 = vcmask 195584
          %v1160 = vsel %vm1159, %v1158, %v1152
          %vm1161 = vcmask 293888
          %v1162 = vsel %vm1161, %v1160, %v1156
          %v1163 = vld [vmem:[%s7] sm:$0xf]
          %v1164 = vpack.c.bf16 %v1162, %v1162
          %v1165 = vld [vmem:[%s4] sm:$0xf]
          %v1166 = vld [vmem:[%s4 + $0x4] sm:$0xf]
          %v1167 = vld [vmem:[%s4 + $0x8] sm:$0xf]
          %v1168 = vld [vmem:[%s4 + $0xc] sm:$0xf]
          %v1169 = vld [vmem:[%s4 + $0x10] sm:$0xf]
          %v1170 = vld [vmem:[%s4 + $0x14] sm:$0xf]
          %v1177 = vunpack.c.l.b16 %v1165
          %v1178 = vunpack.c.l.b16 %v1166
          %v1179 = vunpack.c.l.b16 %v1167
          %v1180 = vunpack.c.l.b16 %v1168
          %v1181 = vunpack.c.l.b16 %v1169
          %v1182 = vunpack.c.l.b16 %v1170
          %v1183 = vpack.c.b16 %v1178, %v1177
          %v1184 = vpack.c.b16 %v1180, %v1179
          %v1185 = vpack.c.b16 %v1182, %v1181
          %vm1189 = vcmask 392192
          %v1191 = vsel %vm1189, %v1164, 0
          %1193 = vmatprep.subr.bf16.mxu0 0
          %1194 = vmatpush1.bf16.msra.mxu0 %v1183
          %1195 = vmatprep.subr.bf16.mxu0 0
          %1196 = vmatpush1.bf16.msra.mxu0 %v1184
          %1197 = vmatprep.subr.bf16.mxu0 0
          %1198 = vmatpush1.bf16.msra.mxu0 %v1185
          %1199 = vmatprep.subr.bf16.mxu0 0
          %1200 = vmatpush1.bf16.msra.mxu0 0
          %1201 = vmatprep.subr.bf16.mxu0 0
          %1202 = vmatpush1.bf16.msra.mxu0 0
          %1203 = vmatprep.subr.bf16.mxu0 0
          %1204 = vmatpush1.bf16.msra.mxu0 0
          %1205 = vmatprep.subr.bf16.mxu0 0
          %1206 = vmatpush1.bf16.msra.mxu0 0
          %1207 = vmatprep.subr.bf16.mxu0 0
          %1208 = vmatpush1.bf16.msra.mxu0 0
          %1209 = vmatprep.subr.bf16.mxu0 0
          %1210 = vmatpush1.bf16.msra.mxu0 0
          %1211 = vmatprep.subr.bf16.mxu0 0
          %1212 = vmatpush1.bf16.msra.mxu0 0
          %1213 = vmatprep.subr.bf16.mxu0 0
          %1214 = vmatpush1.bf16.msra.mxu0 0
          %1215 = vmatprep.subr.bf16.mxu0 0
          %1216 = vmatpush1.bf16.msra.mxu0 0
          %1217 = vmatprep.subr.bf16.mxu0 0
          %1218 = vmatpush1.bf16.msra.mxu0 0
          %1219 = vmatprep.subr.bf16.mxu0 0
          %1220 = vmatpush1.bf16.msra.mxu0 0
          %1221 = vmatprep.subr.bf16.mxu0 0
          %1222 = vmatpush1.bf16.msra.mxu0 0
          %1223 = vmatprep.subr.bf16.mxu0 0
          %1224 = vmatpush1.bf16.msra.mxu0 0
          %1225 = vmatprep.mubr.bf16.mxu0 0
          %1226 = vmatmul.mubr.bf16.gmra.mrb[0].mxu0 %v1191
          %v1227 = vpop.f32.mrb[0].mxu0
          %v1228 = vadd.f32 0.0, %v1227
          %v1229 = vpop.f32.mrb[0].mxu0
          %v1230 = vpop.f32.mrb[0].mxu0
          %v1231 = vpop.f32.mrb[0].mxu0
          %1232 = vdwg.mxu0
          %v1233 = vsel %vm1189, %v1228, 0.0
          %1234 = vadd.xlane.f32.xlu0 %v1233
          %v1235 = vpop.xlane.xlu0 %1234
          %v1236 = vrcp.pop 48.0
          %v1237 = vmul.f32 %v1235, %v1236
          %v1238 = vsub.f32 %v1228, %v1237
          %v1239 = vmul.f32 %v1238, %v1238
          %v1240 = vsel %vm1189, %v1239, 0.0
          %1241 = vadd.xlane.f32.xlu0 %v1240
          %v1242 = vpop.xlane.xlu0 %1241
          %v1243 = vmul.f32 %v1242, %v1236
          %v1244 = vadd.f32 %v1243, 1e-05
          %v1245 = vrsqrt.pop %v1244
          %v1246 = vmul.f32 %v1238, %v1245
          %v1247 = vlaneseq
          %v1248 = vshrl.u32 %v1247, 7
          %v1249 = vsub.s32 0, %v1248
          %v1250 = vrot.slane %v1163, %v1249
          %v1251 = vmul.f32 %v1246, %v1250
          %v1252 = vlaneseq
          %v1253 = vshrl.u32 %v1252, 7
          %v1254 = vsub.s32 1, %v1253
          %v1255 = vrot.slane %v1163, %v1254
          %v1256 = vadd.f32 %v1251, %v1255
          %v1257 = vld [vmem:[%s566] sm:$0xff]
          %1259 = vrot.lane.b32.xlu0 %v1256, 48
          %v1260 = vpop.permute.xlu0 %1259
          %v1262 = vsel %vm1189, %v1257, %v1260
          %v1263 = vpack.c.bf16 %v1262, %v1262
          %v1264 = vld [vmem:[%s5] sm:$0xf]
          %v1265 = vld [vmem:[%s5 + $0x4] sm:$0xf]
          %v1266 = vld [vmem:[%s5 + $0x8] sm:$0xf]
          %v1267 = vld [vmem:[%s5 + $0xc] sm:$0xf]
          %v1268 = vld [vmem:[%s5 + $0x10] sm:$0xf]
          %v1269 = vld [vmem:[%s5 + $0x14] sm:$0xf]
          %v1270 = vld [vmem:[%s5 + $0x18] sm:$0xf]
          %v1271 = vld [vmem:[%s5 + $0x1c] sm:$0xf]
          %v1272 = vld [vmem:[%s5 + $0x20] sm:$0xf]
          %v1273 = vld [vmem:[%s5 + $0x24] sm:$0xf]
          %v1274 = vld [vmem:[%s5 + $0x28] sm:$0xf]
          %v1275 = vld [vmem:[%s5 + $0x2c] sm:$0xf]
          %v1288 = vunpack.c.l.b16 %v1264
          %v1289 = vunpack.c.l.b16 %v1265
          %v1290 = vunpack.c.l.b16 %v1266
          %v1291 = vunpack.c.l.b16 %v1267
          %v1292 = vunpack.c.l.b16 %v1268
          %v1293 = vunpack.c.l.b16 %v1269
          %v1294 = vunpack.c.l.b16 %v1270
          %v1295 = vunpack.c.l.b16 %v1271
          %v1296 = vunpack.c.l.b16 %v1272
          %v1297 = vunpack.c.l.b16 %v1273
          %v1298 = vunpack.c.l.b16 %v1274
          %v1299 = vunpack.c.l.b16 %v1275
          %v1300 = vpack.c.b16 %v1289, %v1288
          %v1301 = vpack.c.b16 %v1291, %v1290
          %v1302 = vpack.c.b16 %v1293, %v1292
          %v1303 = vpack.c.b16 %v1295, %v1294
          %v1304 = vpack.c.b16 %v1297, %v1296
          %v1305 = vpack.c.b16 %v1299, %v1298
          %vm1312 = vcmask 785408
          %v1314 = vsel %vm1312, %v1263, 0
          %1316 = vmatprep.subr.bf16.mxu0 0
          %1317 = vmatpush1.bf16.msra.mxu0 %v1300
          %1318 = vmatprep.subr.bf16.mxu0 0
          %1319 = vmatpush1.bf16.msra.mxu0 %v1301
          %1320 = vmatprep.subr.bf16.mxu0 0
          %1321 = vmatpush1.bf16.msra.mxu0 %v1302
          %1322 = vmatprep.subr.bf16.mxu0 0
          %1323 = vmatpush1.bf16.msra.mxu0 %v1303
          %1324 = vmatprep.subr.bf16.mxu0 0
          %1325 = vmatpush1.bf16.msra.mxu0 %v1304
          %1326 = vmatprep.subr.bf16.mxu0 0
          %1327 = vmatpush1.bf16.msra.mxu0 %v1305
          %1328 = vmatprep.subr.bf16.mxu0 0
          %1329 = vmatpush1.bf16.msra.mxu0 0
          %1330 = vmatprep.subr.bf16.mxu0 0
          %1331 = vmatpush1.bf16.msra.mxu0 0
          %1332 = vmatprep.subr.bf16.mxu0 0
          %1333 = vmatpush1.bf16.msra.mxu0 0
          %1334 = vmatprep.subr.bf16.mxu0 0
          %1335 = vmatpush1.bf16.msra.mxu0 0
          %1336 = vmatprep.subr.bf16.mxu0 0
          %1337 = vmatpush1.bf16.msra.mxu0 0
          %1338 = vmatprep.subr.bf16.mxu0 0
          %1339 = vmatpush1.bf16.msra.mxu0 0
          %1340 = vmatprep.subr.bf16.mxu0 0
          %1341 = vmatpush1.bf16.msra.mxu0 0
          %1342 = vmatprep.subr.bf16.mxu0 0
          %1343 = vmatpush1.bf16.msra.mxu0 0
          %1344 = vmatprep.subr.bf16.mxu0 0
          %1345 = vmatpush1.bf16.msra.mxu0 0
          %1346 = vmatprep.subr.bf16.mxu0 0
          %1347 = vmatpush1.bf16.msra.mxu0 0
          %1348 = vmatprep.mubr.bf16.mxu0 0
          %1349 = vmatmul.mubr.bf16.gmra.mrb[0].mxu0 %v1314
          %v1350 = vpop.f32.mrb[0].mxu0
          %v1351 = vadd.f32 0.0, %v1350
          %v1352 = vpop.f32.mrb[0].mxu0
          %v1353 = vpop.f32.mrb[0].mxu0
          %v1354 = vpop.f32.mrb[0].mxu0
          %1355 = vdwg.mxu0
          %v1356 = vmax.f32 %v1351, 0.0
          %v1357 = vpack.c.bf16 %v1356, %v1356
          %v1358 = vld [vmem:[%s6] sm:$0xf]
          %v1359 = vld [vmem:[%s6 + $0x4] sm:$0xf]
          %v1360 = vld [vmem:[%s6 + $0x8] sm:$0xf]
          %v1361 = vld [vmem:[%s6 + $0xc] sm:$0xf]
          %v1362 = vld [vmem:[%s6 + $0x10] sm:$0xf]
          %v1363 = vld [vmem:[%s6 + $0x14] sm:$0xf]
          %v1364 = vld [vmem:[%s6 + $0x18] sm:$0xf]
          %v1365 = vld [vmem:[%s6 + $0x1c] sm:$0xf]
          %v1366 = vld [vmem:[%s6 + $0x20] sm:$0xf]
          %v1367 = vld [vmem:[%s6 + $0x24] sm:$0xf]
          %v1368 = vld [vmem:[%s6 + $0x28] sm:$0xf]
          %v1369 = vld [vmem:[%s6 + $0x2c] sm:$0xf]
          %v1382 = vunpack.c.l.b16 %v1358
          %v1383 = vunpack.c.l.b16 %v1359
          %v1384 = vunpack.c.l.b16 %v1360
          %v1385 = vunpack.c.l.b16 %v1361
          %v1386 = vunpack.c.l.b16 %v1362
          %v1387 = vunpack.c.l.b16 %v1363
          %v1388 = vunpack.c.l.b16 %v1364
          %v1389 = vunpack.c.l.b16 %v1365
          %v1390 = vunpack.c.l.b16 %v1366
          %v1391 = vunpack.c.l.b16 %v1367
          %v1392 = vunpack.c.l.b16 %v1368
          %v1393 = vunpack.c.l.b16 %v1369
          %v1394 = vpack.c.b16 %v1383, %v1382
          %v1395 = vpack.c.b16 %v1385, %v1384
          %v1396 = vpack.c.b16 %v1387, %v1386
          %v1397 = vpack.c.b16 %v1389, %v1388
          %v1398 = vpack.c.b16 %v1391, %v1390
          %v1399 = vpack.c.b16 %v1393, %v1392
          %v1407 = vsel %vm1312, %v1357, 0
          %1409 = vmatprep.subr.bf16.mxu0 0
          %1410 = vmatpush1.bf16.msra.mxu0 %v1394
          %1411 = vmatprep.subr.bf16.mxu0 0
          %1412 = vmatpush1.bf16.msra.mxu0 %v1395
          %1413 = vmatprep.subr.bf16.mxu0 0
          %1414 = vmatpush1.bf16.msra.mxu0 %v1396
          %1415 = vmatprep.subr.bf16.mxu0 0
          %1416 = vmatpush1.bf16.msra.mxu0 %v1397
          %1417 = vmatprep.subr.bf16.mxu0 0
          %1418 = vmatpush1.bf16.msra.mxu0 %v1398
          %1419 = vmatprep.subr.bf16.mxu0 0
          %1420 = vmatpush1.bf16.msra.mxu0 %v1399
          %1421 = vmatprep.subr.bf16.mxu0 0
          %1422 = vmatpush1.bf16.msra.mxu0 0
          %1423 = vmatprep.subr.bf16.mxu0 0
          %1424 = vmatpush1.bf16.msra.mxu0 0
          %1425 = vmatprep.subr.bf16.mxu0 0
          %1426 = vmatpush1.bf16.msra.mxu0 0
          %1427 = vmatprep.subr.bf16.mxu0 0
          %1428 = vmatpush1.bf16.msra.mxu0 0
          %1429 = vmatprep.subr.bf16.mxu0 0
          %1430 = vmatpush1.bf16.msra.mxu0 0
          %1431 = vmatprep.subr.bf16.mxu0 0
          %1432 = vmatpush1.bf16.msra.mxu0 0
          %1433 = vmatprep.subr.bf16.mxu0 0
          %1434 = vmatpush1.bf16.msra.mxu0 0
          %1435 = vmatprep.subr.bf16.mxu0 0
          %1436 = vmatpush1.bf16.msra.mxu0 0
          %1437 = vmatprep.subr.bf16.mxu0 0
          %1438 = vmatpush1.bf16.msra.mxu0 0
          %1439 = vmatprep.subr.bf16.mxu0 0
          %1440 = vmatpush1.bf16.msra.mxu0 0
          %1441 = vmatprep.mubr.bf16.mxu0 0
          %1442 = vmatmul.mubr.bf16.gmra.mrb[0].mxu0 %v1407
          %v1443 = vpop.f32.mrb[0].mxu0
          %v1444 = vadd.f32 0.0, %v1443
          %v1445 = vpop.f32.mrb[0].mxu0
          %v1446 = vpop.f32.mrb[0].mxu0
          %v1447 = vpop.f32.mrb[0].mxu0
          %1448 = vdwg.mxu0
          %v1449 = vsel %vm1189, %v1444, 0.0
          %1450 = vadd.xlane.f32.xlu0 %v1449
          %v1451 = vpop.xlane.xlu0 %1450
          %v1452 = vmul.f32 %v1451, %v1236
          %v1453 = vsub.f32 %v1444, %v1452
          %v1454 = vmul.f32 %v1453, %v1453
          %v1455 = vsel %vm1189, %v1454, 0.0
          %1456 = vadd.xlane.f32.xlu0 %v1455
          %v1457 = vpop.xlane.xlu0 %1456
          %v1458 = vmul.f32 %v1457, %v1236
          %v1459 = vadd.f32 %v1458, 1e-05
          %v1460 = vrsqrt.pop %v1459
          %v1461 = vmul.f32 %v1453, %v1460
          %v1462 = vlaneseq
          %v1463 = vshrl.u32 %v1462, 7
          %v1464 = vsub.s32 2, %v1463
          %v1465 = vrot.slane %v1163, %v1464
          %v1466 = vmul.f32 %v1461, %v1465
          %v1467 = vlaneseq
          %v1468 = vshrl.u32 %v1467, 7
          %v1469 = vsub.s32 3, %v1468
          %v1470 = vrot.slane %v1163, %v1469
          %v1471 = vadd.f32 %v1466, %v1470
          %v1472 = vadd.f32 %v1257, %v1471
          %1473 = vst.msk [vmem:[%s558] sm:$0xff] %vm1189, %v1472
        $region183: #{tpu_custom_call.1} parent=162 // pred_fallthru
          _
        %s1474 = sand.u32 %s247, 1
        %s1475 = scalar_lea.sflag [#allocation9], %s1474
        %s1476 = sand.u32 %s247, 1
        %s1477 = smul.addr %s1476, 8
        %s1478 = scalar_lea.vmem [#allocation8], %s1477
        // Predicated region
        $region184: #{tpu_custom_call.1} parent=162 // pred_check
          %p1479 = pneg %p257
        $region185: #{tpu_custom_call.1} parent=162 // pred_check_branch
          %1481 = sbr.rel (%p1479) target = $region187
        $region186: #{tpu_custom_call.1} parent=162 // pred_region
          %s1483 = ssub.s32 128, 128
          %1484 = vsyncadd %s1475, %s1483
          %s1485 = smul.addr %s27, 2
          %s1486 = sadd.s32 %s28, %s1485
          %s1487 = smul.addr %s1486, 128
          %s1488 = scalar_lea.hbm %s8, %s1487
          %s1490 = sshll.u32 %s1478, 4
          %s1491 = int_to_ptr.vmem [resolvable:$true] %s1490
          %1493 = dma.vmem_to_hbm [thread:$0]  %s1491, 128, %s1488, %s1475
        $region187: #{tpu_custom_call.1} parent=162 // pred_fallthru
          _
      $region163: #{tpu_custom_call.1} parent=5 // pred_fallthru
        _
      %p1494 = scmp.le.s32.totalorder 2, %s17
      // Predicated region
      $region188: #{tpu_custom_call.1} parent=5 // pred_check
        %p1495 = pneg %p1494
      $region189: #{tpu_custom_call.1} parent=5 // pred_check_branch
        %1497 = sbr.rel (%p1495) target = $region191
      $region190: #{tpu_custom_call.1} parent=5 // pred_region
        %s1498 = ssub.s32 %s17, 2
        // Predicated region
        $region192: #{tpu_custom_call.1} parent=190 // pred_check
          %p1499 = pneg %p263
        $region193: #{tpu_custom_call.1} parent=190 // pred_check_branch
          %1501 = sbr.rel (%p1499) target = $region195
        $region194: #{tpu_custom_call.1} parent=190 // pred_region
          %s1502 = sand.u32 %s248, 1
          %s1503 = scalar_lea.sflag [#allocation9], %s1502
          %s1504 = sand.u32 %s248, 1
          %s1505 = smul.addr %s1504, 8
          %s1506 = scalar_lea.vmem [#allocation8], %s1505
          %1507 = dma.done %s1503, 128
        $region195: #{tpu_custom_call.1} parent=190 // pred_fallthru
          _
      $region191: #{tpu_custom_call.1} parent=5 // pred_fallthru
        _
    $region6: #{tpu_custom_call.1} parent=1 // loop_footer
      %s21 = sadd.s32 1, %s17
    $region7: #{tpu_custom_call.1} parent=1 // loop_footer_branch
      %16 = sbr.rel target = $region3
    $region8: #{tpu_custom_call.1} parent=1 // loop_exit
      _
    %1508 = vsyncpa [#allocation9], 1
    %s1509 = scalar_lea.sflag [#allocation9], 1
    %1510 = vsyncpa %s1509, 1

</llo_original>
